<compile_context>
chip_gen: v6e
topology: v6e:2x2x1
jax: 0.10.0
libtpu: 0.0.40
codegen_flags: <defaults>
</compile_context>

<pallas_src>
import functools
import math

import jax
import jax.numpy as jnp
from jax.experimental import pallas as pl
from jax.experimental.pallas import tpu as pltpu

LN_EPS = 1e-12  # AlbertConfig default layer_norm_eps


def _layer_norm(x, gamma, beta):
    mean = jnp.mean(x, axis=-1, keepdims=True)
    var = jnp.mean((x - mean) ** 2, axis=-1, keepdims=True)
    return (x - mean) * jax.lax.rsqrt(var + LN_EPS) * gamma + beta


def _gelu_new(x):
    # ACT2FN["gelu_new"] (tanh approximation) — AlbertConfig default hidden_act
    return 0.5 * x * (1.0 + jnp.tanh(0.7978845608028654 * (x + 0.044715 * x * x * x)))


def albert_layer_kernel(xf_ref, mask_ref,
                        wq_ref, bq_ref, wkv_ref, bkv_ref,
                        wo_ref, bo_ref, g1_ref, be1_ref,
                        w1_ref, b1_ref, w2_ref, b2_ref,
                        g2_ref, be2_ref,
                        out_ref,
                        k_scr, v_scr,
                        *, num_heads, q_tile, k_tile, ffn_chunk):
    S, H = xf_ref.shape[1], xf_ref.shape[2]
    nh, TQ, TK = num_heads, q_tile, k_tile
    d = H // nh
    I = w1_ref.shape[1]
    scale = 1.0 / math.sqrt(d)

    # --- Fused K|V projection: once per batch row (query-tile 0), reused across tiles ---
    @pl.when(pl.program_id(1) == 0)
    def _():
        kv = (jnp.dot(xf_ref[0], wkv_ref[...], preferred_element_type=jnp.float32)
              + bkv_ref[...])                                          # (S, 2H) f32
        # head-major bf16 scratch: the head-split relayout happens once per batch
        # row instead of once per (query tile, key chunk)
        k_scr[...] = kv[:, :H].reshape(S, nh, d).swapaxes(0, 1).astype(jnp.bfloat16)
        v_scr[...] = kv[:, H:].reshape(S, nh, d).swapaxes(0, 1).astype(jnp.bfloat16)

    # --- Query tile sliced from the resident full-sequence block (no duplicate input) ---
    q_start = pl.multiple_of(pl.program_id(1) * TQ, TQ)
    xt = xf_ref[0, pl.ds(q_start, TQ), :]                              # (TQ, H) bf16
    mask = mask_ref[0]                                                 # (1, S)  f32 additive

    # Q projection; 1/sqrt(d) folded into Q (bias included, matching scores/sqrt(d)).
    q = (jnp.dot(xt, wq_ref[...], preferred_element_type=jnp.float32)
         + bq_ref[...]) * scale                                        # (TQ, H) f32
    qh = q.astype(jnp.bfloat16).reshape(TQ, nh, d).swapaxes(0, 1)      # (nh, TQ, d)

    # --- Flash-style online softmax over key tiles (keys already resident in VMEM) ---
    m_i = jnp.full((nh, TQ, 1), -1e30, jnp.float32)
    l_i = jnp.zeros((nh, TQ, 1), jnp.float32)
    acc = jnp.zeros((nh, TQ, d), jnp.float32)
    for kc in range(S // TK):          # static, small trip count; carries serialize chunks
        ks = kc * TK
        kh = k_scr[:, pl.ds(ks, TK), :]                                # (nh, TK, d) bf16
        vh = v_scr[:, pl.ds(ks, TK), :]
        s = jnp.einsum('nqd,nkd->nqk', qh, kh,
                       preferred_element_type=jnp.float32)             # (nh, TQ, TK) f32
        s = s + mask[:, ks:ks + TK][None, :, :]
        m_new = jnp.maximum(m_i, jnp.max(s, axis=-1, keepdims=True))
        alpha = jnp.exp(m_i - m_new)
        p = jnp.exp(s - m_new)          # attention-probs dropout: identity at inference
        l_i = alpha * l_i + jnp.sum(p, axis=-1, keepdims=True)
        acc = alpha * acc + jnp.einsum('nqk,nkd->nqd', p.astype(jnp.bfloat16), vh,
                                       preferred_element_type=jnp.float32)
        m_i = m_new

    # softmax divide -> EUP reciprocal (denominator >= 1, approx is safe)
    ctx = acc * pl.reciprocal(l_i, approx=True)                        # (nh, TQ, d) f32
    context = ctx.astype(jnp.bfloat16).swapaxes(0, 1).reshape(TQ, H)   # head concat

    # einsum('bfnd,ndh->bfh', ctx, W.t().view(n,d,h)) == ctx_flat @ W.T  (wo pre-transposed)
    proj = (jnp.dot(context, wo_ref[...], preferred_element_type=jnp.float32)
            + bo_ref[...])                                             # (TQ, H) f32
    attn_out = _layer_norm(xt.astype(jnp.float32) + proj, g1_ref[...], be1_ref[...])

    # --- FFN with intermediate-dim chunking + full-layer LayerNorm ---
    attn_bf = attn_out.astype(jnp.bfloat16)
    ffn_acc = jnp.zeros((TQ, H), jnp.float32)
    for ic in range(I // ffn_chunk):   # static chunk loop bounds the (TQ, I) f32 buffer
        c0 = ic * ffn_chunk
        h1 = _gelu_new(jnp.dot(attn_bf, w1_ref[:, pl.ds(c0, ffn_chunk)],
                               preferred_element_type=jnp.float32)
                       + b1_ref[:, pl.ds(c0, ffn_chunk)])              # (TQ, IC) f32
        ffn_acc = ffn_acc + jnp.dot(h1.astype(jnp.bfloat16),
                                    w2_ref[pl.ds(c0, ffn_chunk), :],
                                    preferred_element_type=jnp.float32)
    ffn_out = ffn_acc + b2_ref[...]
    out_ref[0] = _layer_norm(ffn_out + attn_out,
                             g2_ref[...], be2_ref[...]).astype(out_ref.dtype)


# ----------------------------- tiling / VMEM sizing -----------------------------

def _round_up(x, m):
    return (x + m - 1) // m * m


def _largest_divisor(n, candidates):
    for c in candidates:
        if c <= n and n % c == 0:
            return c
    return n


def _tpu_vmem_capacity_bytes():
    try:
        info = pltpu.get_tpu_info()
        cap = getattr(info, "vmem_capacity_bytes", None)
        if cap:
            return int(cap)
    except Exception:
        pass
    return 64 << 20   # conservative default (v7x per-TensorCore VMEM)


def _estimate_vmem_bytes(TQ, TK, IC, S, H, I, nh, out_bytes):
    d = H // nh
    d_pad = _round_up(d, 128)
    weights = 2 * (4 * H * H + 2 * H * I)                  # bf16, single-buffered
    params = 4 * (9 * H + I)                               # biases / LN params (f32)
    xf_blk = 2 * S * H                                     # bf16, single-buffered
    mask_blk = 2 * 4 * S
    out_blk = 2 * out_bytes * TQ * H                       # double-buffered output block
    kv_scr = 2 * 2 * nh * S * d_pad                        # head-major bf16 K/V scratch
    kv_tmp = 4 * S * 2 * H                                 # f32 K|V projection temp (t == 0)
    attn = 4 * nh * TQ * TK * 2 + 2 * nh * TQ * TK         # s, p f32 + p bf16 (one chunk live)
    attn += 4 * nh * TQ * (2 + d) + 2 * nh * TQ * d_pad    # m, l, acc + q head-major bf16
    ffn = (4 + 2) * TQ * IC + 4 * TQ * H * 2               # h1 f32+bf16, ffn_acc, attn_out
    misc = 4 * TQ * H * 4
    return (weights + params + xf_blk + mask_blk + out_blk
            + kv_scr + kv_tmp + attn + ffn + misc)


def _select_tiling(S, H, I, nh, out_bytes):
    cap = _tpu_vmem_capacity_bytes()
    if cap >= (96 << 20):
        ceiling = 100 << 20                                # v5e/v6e: 128 MiB physical VMEM
    else:
        ceiling = max(cap - (8 << 20), 28 << 20)           # v7x: 64 MiB per TensorCore
    budget = ceiling - (6 << 20)

    TK = _largest_divisor(S, (256, 128))                   # key-chunk: bound score buffers
    IC = _largest_divisor(I, (1024, 512, 256, 128))        # FFN intermediate chunk

    candidates = [c for c in (512, 256, 128) if S % c == 0]
    if not candidates:
        candidates = [_largest_divisor(S, (128, 64, 32, 16, 8))]
    TQ = candidates[-1]
    for cand in candidates:
        if _estimate_vmem_bytes(cand, TK, IC, S, H, I, nh, out_bytes) <= budget:
            TQ = cand
            break

    est = _estimate_vmem_bytes(TQ, TK, IC, S, H, I, nh, out_bytes)
    vmem_limit = int(min(max(est + (8 << 20), 32 << 20), ceiling))
    return TQ, TK, IC, vmem_limit


# --------------------------------- wrappers ---------------------------------

def run_albert_layer(x, attn_mask, p, num_heads, out_dtype=jnp.float32):
    """One AlbertLayer forward. `p` holds kernel-ready (bf16 / fused K|V) params."""
    B, S, H = x.shape
    I = p["w1"].shape[1]
    assert H % num_heads == 0
    d = H // num_heads
    out_bytes = jnp.dtype(out_dtype).itemsize
    TQ, TK, IC, vmem_limit = _select_tiling(S, H, I, num_heads, out_bytes)
    n_qt = S // TQ

    x_bf16 = x if x.dtype == jnp.bfloat16 else x.astype(jnp.bfloat16)
    mask = attn_mask.astype(jnp.float32)

    # Grid-invariant weights: single-buffered (the block never changes, a second
    # buffer only doubles the resident weight VMEM).
    def wspec(shape):
        return pl.BlockSpec(shape, lambda b, t: (0, 0), pipeline_mode=pl.Buffered(1))

    in_specs = [
        # full-sequence block: block index only changes with b -> single-buffered
        pl.BlockSpec((1, S, H), lambda b, t: (b, 0, 0), pipeline_mode=pl.Buffered(1)),
        pl.BlockSpec((1, 1, S), lambda b, t: (b, 0, 0)),     # additive attention mask
        wspec((H, H)), wspec((1, H)),            # Wq, bq
        wspec((H, 2 * H)), wspec((1, 2 * H)),    # fused Wk|Wv, bk|bv
        wspec((H, H)), wspec((1, H)),            # Wo (attention dense), bo
        wspec((1, H)), wspec((1, H)),            # attention LayerNorm gamma/beta
        wspec((H, I)), wspec((1, I)),            # ffn W1, b1
        wspec((I, H)), wspec((1, H)),            # ffn_output W2, b2
        wspec((1, H)), wspec((1, H)),            # full_layer LayerNorm gamma/beta
    ]

    kernel = functools.partial(albert_layer_kernel, num_heads=num_heads,
                               q_tile=TQ, k_tile=TK, ffn_chunk=IC)
    return pl.pallas_call(
        kernel,
        grid=(B, n_qt),
        in_specs=in_specs,
        out_specs=pl.BlockSpec((1, TQ, H), lambda b, t: (b, t, 0)),
        out_shape=jax.ShapeDtypeStruct((B, S, H), out_dtype),
        scratch_shapes=[pltpu.VMEM((num_heads, S, d), jnp.bfloat16),   # K (head-major)
                        pltpu.VMEM((num_heads, S, d), jnp.bfloat16)],  # V (head-major)
        compiler_params=pltpu.CompilerParams(
            # b "parallel" (megacore shards batch rows); t MUST be "arbitrary":
            # the K/V scratch written at t==0 is reused sequentially across the
            # query tiles of the same batch row.
            dimension_semantics=("parallel", "arbitrary"),
            vmem_limit_bytes=vmem_limit),
    )(x_bf16, mask,
      p["wq"], p["bq"], p["wkv"], p["bkv"],
      p["wo"], p["bo"], p["ln1_g"], p["ln1_b"],
      p["w1"], p["b1"], p["w2"], p["b2"],
      p["ln2_g"], p["ln2_b"])


def prepare_layer_params(p):
    """Cast matmul weights to bf16, fuse Wk|Wv, keep biases/LN params in f32 rows."""
    bf16, f32 = jnp.bfloat16, jnp.float32

    def row(v):
        return jnp.asarray(v).reshape(1, -1).astype(f32)

    return dict(
        wq=p["wq"].astype(bf16), bq=row(p["bq"]),
        wkv=jnp.concatenate([p["wk"], p["wv"]], axis=1).astype(bf16),
        bkv=jnp.concatenate([row(p["bk"]), row(p["bv"])], axis=1),
        wo=p["wo"].astype(bf16), bo=row(p["bo"]),
        ln1_g=row(p["ln1_g"]), ln1_b=row(p["ln1_b"]),
        w1=p["w1"].astype(bf16), b1=row(p["b1"]),
        w2=p["w2"].astype(bf16), b2=row(p["b2"]),
        ln2_g=row(p["ln2_g"]), ln2_b=row(p["ln2_b"]),
    )


def albert_layer_group(hidden_states, attention_mask, layer_params, num_heads,
                       output_attentions=False, output_hidden_states=False):
    """Mirrors AlbertLayerGroup.forward (head_mask = [None]*n, eval mode)."""
    B, S, H = hidden_states.shape
    if attention_mask is None:
        attention_mask = jnp.zeros((B, 1, S), jnp.float32)
    if attention_mask.ndim == 4:                    # HF extended mask (B, 1, 1, S)
        attention_mask = attention_mask.reshape(B, 1, attention_mask.shape[-1])
    assert attention_mask.shape == (B, 1, S)

    # Hoist weight prep (bf16 cast + K|V fusion) out of the per-layer loop; callers
    # that repeat the group can cache the prepared dicts and pass them directly.
    # TODO(synk): AlbertTransformer re-applies this group with shared weights; a
    # cross-call weight-prefetch (P10 semaphore-output future) would keep the bf16
    # weight set VMEM-resident across repeats instead of re-DMA'ing it each call.
    prepared = [p if "wkv" in p else prepare_layer_params(p) for p in layer_params]

    layer_hidden_states = ()
    n = len(prepared)
    for i, kp in enumerate(prepared):
        # bf16 between chained layers (no f32 HBM round-trip); f32 only at the end.
        out_dtype = jnp.float32 if i == n - 1 else jnp.bfloat16
        hidden_states = run_albert_layer(hidden_states, attention_mask, kp,
                                         num_heads, out_dtype=out_dtype)
        if output_hidden_states:
            layer_hidden_states = layer_hidden_states + (hidden_states.astype(jnp.float32),)
    outputs = (hidden_states,)
    if output_hidden_states:
        outputs = outputs + (layer_hidden_states,)
    # TODO(synk): output_attentions would require materializing the per-head probs as
    # an extra kernel output, which conflicts with the online softmax; omitted
    # (config default is False).
    return outputs


# --------------------------- reference / test harness ---------------------------

def albert_layer_reference(x, mask, p, num_heads):
    """Pure-JAX f32 reference mirroring the PyTorch AlbertLayer forward."""
    B, S, H = x.shape
    d = H // num_heads
    q = x @ p["wq"] + p["bq"]
    k = x @ p["wk"] + p["bk"]
    v = x @ p["wv"] + p["bv"]

    def split(t):   # (B, S, H) -> (B, nh, S, d)
        return t.reshape(B, S, num_heads, d).transpose(0, 2, 1, 3)

    qh, kh, vh = split(q), split(k), split(v)
    scores = (qh @ kh.transpose(0, 1, 3, 2)) / math.sqrt(d) + mask[:, None, :, :]
    probs = jax.nn.softmax(scores, axis=-1)
    ctx = (probs @ vh).transpose(0, 2, 1, 3).reshape(B, S, H)
    attn_out = _layer_norm(x + ctx @ p["wo"] + p["bo"], p["ln1_g"], p["ln1_b"])
    ffn = _gelu_new(attn_out @ p["w1"] + p["b1"]) @ p["w2"] + p["b2"]
    return _layer_norm(ffn + attn_out, p["ln2_g"], p["ln2_b"])


def init_layer_params(key, hidden, intermediate):
    ks = jax.random.split(key, 12)
    std = 0.02

    def w(k, fi, fo):
        return jax.random.normal(k, (fi, fo), jnp.float32) * std

    def b(k, fo):
        return jax.random.normal(k, (1, fo), jnp.float32) * std

    return dict(
        wq=w(ks[0], hidden, hidden),        bq=b(ks[1], hidden),
        wk=w(ks[2], hidden, hidden),        bk=b(ks[3], hidden),
        wv=w(ks[4], hidden, hidden),        bv=b(ks[5], hidden),
        wo=w(ks[6], hidden, hidden),        bo=b(ks[7], hidden),
        ln1_g=jnp.ones((1, hidden), jnp.float32),
        ln1_b=jnp.zeros((1, hidden), jnp.float32),
        w1=w(ks[8], hidden, intermediate),  b1=b(ks[9], intermediate),
        w2=w(ks[10], intermediate, hidden), b2=b(ks[11], hidden),
        ln2_g=jnp.ones((1, hidden), jnp.float32),
        ln2_b=jnp.zeros((1, hidden), jnp.float32),
    )


if __name__ == "__main__":
    B, S, H = 2, 8, 32
    NUM_HEADS = 4
    INTERMEDIATE = 64
    INNER_GROUP_NUM = 2

    root = jax.random.PRNGKey(0)
    k_x, k_p = jax.random.split(root)

    hidden_states = jax.random.normal(k_x, (B, S, H), jnp.float32)

    # Additive attention mask (HF style: (1 - pad_mask) * -10000); pad the last
    # 2 tokens of the second batch element.
    pad = jnp.ones((B, S), jnp.float32).at[1, -2:].set(0.0)
    attention_mask = ((1.0 - pad) * -10000.0)[:, None, :]          # (B, 1, S)

    layer_keys = jax.random.split(k_p, INNER_GROUP_NUM)
    layer_params = [init_layer_params(k, H, INTERMEDIATE) for k in layer_keys]

    outputs = albert_layer_group(hidden_states, attention_mask, layer_params,
                                 NUM_HEADS)
    out = jax.block_until_ready(outputs[0])
    assert out.shape == (B, S, H) and out.dtype == jnp.float32
    assert bool(jnp.all(jnp.isfinite(out)))

    # Loose-tolerance check against the pure-JAX f32 reference (the kernel uses
    # bf16 weights/activations and an approx softmax reciprocal).
    ref = hidden_states
    for p in layer_params:
        ref = albert_layer_reference(ref, attention_mask, p, NUM_HEADS)
    err = float(jnp.max(jnp.abs(out - ref)))
    assert err < 0.2, f"max abs err vs reference: {err}"

    print("KERNEL_OK")
</pallas_src>

<mosaic_0001>
module attributes {stable_mosaic.version = 11 : i64} {
  func.func @albert_layer_kernel(%arg0: i32, %arg1: i32, %arg2: memref<1x8x32xbf16, #tpu.memory_space<vmem>>, %arg3: memref<1x1x8xf32, #tpu.memory_space<vmem>>, %arg4: memref<32x32xbf16, #tpu.memory_space<vmem>>, %arg5: memref<1x32xf32, #tpu.memory_space<vmem>>, %arg6: memref<32x64xbf16, #tpu.memory_space<vmem>>, %arg7: memref<1x64xf32, #tpu.memory_space<vmem>>, %arg8: memref<32x32xbf16, #tpu.memory_space<vmem>>, %arg9: memref<1x32xf32, #tpu.memory_space<vmem>>, %arg10: memref<1x32xf32, #tpu.memory_space<vmem>>, %arg11: memref<1x32xf32, #tpu.memory_space<vmem>>, %arg12: memref<32x64xbf16, #tpu.memory_space<vmem>>, %arg13: memref<1x64xf32, #tpu.memory_space<vmem>>, %arg14: memref<64x32xbf16, #tpu.memory_space<vmem>>, %arg15: memref<1x32xf32, #tpu.memory_space<vmem>>, %arg16: memref<1x32xf32, #tpu.memory_space<vmem>>, %arg17: memref<1x32xf32, #tpu.memory_space<vmem>>, %arg18: memref<1x8x32xbf16, #tpu.memory_space<vmem>>, %arg19: memref<4x8x8xbf16, #tpu.memory_space<vmem>>, %arg20: memref<4x8x8xbf16, #tpu.memory_space<vmem>>) attributes {dimension_semantics = [#tpu.dimension_semantics<parallel>, #tpu.dimension_semantics<arbitrary>], iteration_bounds = array<i64: 2, 1>, scalar_prefetch = 0 : i64, scratch_operands = 2 : i64, tpu.core_type = #tpu.core_type<tc>, window_params = [{pipeline_mode = #tpu.pipeline_mode<synchronous>, transform_indices = @transform_0, window_bounds = array<i64: 1, 8, 32>}, {transform_indices = @transform_1, window_bounds = array<i64: 1, 1, 8>}, {pipeline_mode = #tpu.pipeline_mode<synchronous>, transform_indices = @transform_2, window_bounds = array<i64: 32, 32>}, {pipeline_mode = #tpu.pipeline_mode<synchronous>, transform_indices = @transform_3, window_bounds = array<i64: 1, 32>}, {pipeline_mode = #tpu.pipeline_mode<synchronous>, transform_indices = @transform_4, window_bounds = array<i64: 32, 64>}, {pipeline_mode = #tpu.pipeline_mode<synchronous>, transform_indices = @transform_5, window_bounds = array<i64: 1, 64>}, {pipeline_mode = #tpu.pipeline_mode<synchronous>, transform_indices = @transform_6, window_bounds = array<i64: 32, 32>}, {pipeline_mode = #tpu.pipeline_mode<synchronous>, transform_indices = @transform_7, window_bounds = array<i64: 1, 32>}, {pipeline_mode = #tpu.pipeline_mode<synchronous>, transform_indices = @transform_8, window_bounds = array<i64: 1, 32>}, {pipeline_mode = #tpu.pipeline_mode<synchronous>, transform_indices = @transform_9, window_bounds = array<i64: 1, 32>}, {pipeline_mode = #tpu.pipeline_mode<synchronous>, transform_indices = @transform_10, window_bounds = array<i64: 32, 64>}, {pipeline_mode = #tpu.pipeline_mode<synchronous>, transform_indices = @transform_11, window_bounds = array<i64: 1, 64>}, {pipeline_mode = #tpu.pipeline_mode<synchronous>, transform_indices = @transform_12, window_bounds = array<i64: 64, 32>}, {pipeline_mode = #tpu.pipeline_mode<synchronous>, transform_indices = @transform_13, window_bounds = array<i64: 1, 32>}, {pipeline_mode = #tpu.pipeline_mode<synchronous>, transform_indices = @transform_14, window_bounds = array<i64: 1, 32>}, {pipeline_mode = #tpu.pipeline_mode<synchronous>, transform_indices = @transform_15, window_bounds = array<i64: 1, 32>}, {transform_indices = @transform_16, window_bounds = array<i64: 1, 8, 32>}]} {
    %c0_i32 = arith.constant 0 : i32
    %0 = arith.cmpi eq, %arg1, %c0_i32 : i32
    %1 = arith.extui %0 : i1 to i32
    %c0_i32_0 = arith.constant 0 : i32
    %2 = arith.cmpi ne, %1, %c0_i32_0 : i32
    scf.if %2 {
      %c0_64 = arith.constant 0 : index
      %c0_65 = arith.constant 0 : index
      %c0_66 = arith.constant 0 : index
      %139 = vector.load %arg2[%c0_64, %c0_65, %c0_66] : memref<1x8x32xbf16, #tpu.memory_space<vmem>>, vector<1x8x32xbf16>
      %140 = vector.shape_cast %139 : vector<1x8x32xbf16> to vector<8x32xbf16>
      %c0_67 = arith.constant 0 : index
      %c0_68 = arith.constant 0 : index
      %141 = vector.load %arg6[%c0_67, %c0_68] : memref<32x64xbf16, #tpu.memory_space<vmem>>, vector<32x64xbf16>
      %cst_69 = arith.constant dense<0.000000e+00> : vector<8x64xf32>
      %142 = tpu.matmul %140, %141, %cst_69 {dimension_numbers = #tpu.dot_dimension_numbers<[1], [0], [0], [1], [0, 0, 1, 1], [], []>} : vector<8x32xbf16>, vector<32x64xbf16>, vector<8x64xf32> -> vector<8x64xf32>
      %c0_70 = arith.constant 0 : index
      %c0_71 = arith.constant 0 : index
      %143 = vector.load %arg7[%c0_70, %c0_71] : memref<1x64xf32, #tpu.memory_space<vmem>>, vector<1x64xf32>
      %144 = vector.broadcast %143 : vector<1x64xf32> to vector<8x64xf32>
      %145 = arith.addf %142, %144 : vector<8x64xf32>
      %146 = vector.extract_strided_slice %145 {offsets = [0, 0], sizes = [8, 32], strides = [1, 1]} : vector<8x64xf32> to vector<8x32xf32>
      %147 = vector.shape_cast %146 : vector<8x32xf32> to vector<8x4x8xf32>
      %148 = tpu.transpose %147, [1, 0, 2] : vector<8x4x8xf32> -> vector<4x8x8xf32>
      %149 = arith.truncf %148 : vector<4x8x8xf32> to vector<4x8x8xbf16>
      %c0_72 = arith.constant 0 : index
      %c0_73 = arith.constant 0 : index
      %c0_74 = arith.constant 0 : index
      %150 = vector.load %arg19[%c0_72, %c0_73, %c0_74] : memref<4x8x8xbf16, #tpu.memory_space<vmem>>, vector<4x8x8xbf16>
      tpu.vector_store %arg19[%c0_72, %c0_73, %c0_74], %149 {strides = array<i32>} : memref<4x8x8xbf16, #tpu.memory_space<vmem>>, vector<4x8x8xbf16>,
      %151 = vector.extract_strided_slice %145 {offsets = [0, 32], sizes = [8, 32], strides = [1, 1]} : vector<8x64xf32> to vector<8x32xf32>
      %152 = vector.shape_cast %151 : vector<8x32xf32> to vector<8x4x8xf32>
      %153 = tpu.transpose %152, [1, 0, 2] : vector<8x4x8xf32> -> vector<4x8x8xf32>
      %154 = arith.truncf %153 : vector<4x8x8xf32> to vector<4x8x8xbf16>
      %c0_75 = arith.constant 0 : index
      %c0_76 = arith.constant 0 : index
      %c0_77 = arith.constant 0 : index
      %155 = vector.load %arg20[%c0_75, %c0_76, %c0_77] : memref<4x8x8xbf16, #tpu.memory_space<vmem>>, vector<4x8x8xbf16>
      tpu.vector_store %arg20[%c0_75, %c0_76, %c0_77], %154 {strides = array<i32>} : memref<4x8x8xbf16, #tpu.memory_space<vmem>>, vector<4x8x8xbf16>,
    } else {
    }
    %c8_i32 = arith.constant 8 : i32
    %3 = arith.muli %arg1, %c8_i32 : i32
    %4 = tpu.assume_multiple %3, 8 : i32
    %c0 = arith.constant 0 : index
    %5 = arith.index_cast %4 : i32 to index
    %c0_1 = arith.constant 0 : index
    %6 = vector.load %arg2[%c0, %5, %c0_1] : memref<1x8x32xbf16, #tpu.memory_space<vmem>>, vector<1x8x32xbf16>
    %7 = vector.shape_cast %6 : vector<1x8x32xbf16> to vector<8x32xbf16>
    %c0_2 = arith.constant 0 : index
    %c0_3 = arith.constant 0 : index
    %c0_4 = arith.constant 0 : index
    %8 = vector.load %arg3[%c0_2, %c0_3, %c0_4] : memref<1x1x8xf32, #tpu.memory_space<vmem>>, vector<1x1x8xf32>
    %9 = vector.shape_cast %8 : vector<1x1x8xf32> to vector<1x8xf32>
    %c0_5 = arith.constant 0 : index
    %c0_6 = arith.constant 0 : index
    %10 = vector.load %arg4[%c0_5, %c0_6] : memref<32x32xbf16, #tpu.memory_space<vmem>>, vector<32x32xbf16>
    %cst = arith.constant dense<0.000000e+00> : vector<8x32xf32>
    %11 = tpu.matmul %7, %10, %cst {dimension_numbers = #tpu.dot_dimension_numbers<[1], [0], [0], [1], [0, 0, 1, 1], [], []>} : vector<8x32xbf16>, vector<32x32xbf16>, vector<8x32xf32> -> vector<8x32xf32>
    %c0_7 = arith.constant 0 : index
    %c0_8 = arith.constant 0 : index
    %12 = vector.load %arg5[%c0_7, %c0_8] : memref<1x32xf32, #tpu.memory_space<vmem>>, vector<1x32xf32>
    %13 = vector.broadcast %12 : vector<1x32xf32> to vector<8x32xf32>
    %14 = arith.addf %11, %13 : vector<8x32xf32>
    %cst_9 = arith.constant 0.353553385 : f32
    %15 = vector.broadcast %cst_9 : f32 to vector<8x32xf32>
    %16 = arith.mulf %14, %15 : vector<8x32xf32>
    %17 = arith.truncf %16 : vector<8x32xf32> to vector<8x32xbf16>
    %18 = vector.shape_cast %17 : vector<8x32xbf16> to vector<8x4x8xbf16>
    %19 = tpu.transpose %18, [1, 0, 2] : vector<8x4x8xbf16> -> vector<4x8x8xbf16>
    %cst_10 = arith.constant -1.000000e+30 : f32
    %20 = vector.broadcast %cst_10 : f32 to vector<4x8x1xf32>
    %cst_11 = arith.constant 0.000000e+00 : f32
    %21 = vector.broadcast %cst_11 : f32 to vector<4x8x1xf32>
    %cst_12 = arith.constant 0.000000e+00 : f32
    %22 = vector.broadcast %cst_12 : f32 to vector<4x8x8xf32>
    %c0_13 = arith.constant 0 : index
    %c0_14 = arith.constant 0 : index
    %c0_15 = arith.constant 0 : index
    %23 = vector.load %arg19[%c0_13, %c0_14, %c0_15] : memref<4x8x8xbf16, #tpu.memory_space<vmem>>, vector<4x8x8xbf16>
    %c0_16 = arith.constant 0 : index
    %c0_17 = arith.constant 0 : index
    %c0_18 = arith.constant 0 : index
    %24 = vector.load %arg20[%c0_16, %c0_17, %c0_18] : memref<4x8x8xbf16, #tpu.memory_space<vmem>>, vector<4x8x8xbf16>
    "tpu.trace_start"() <{level = 10 : i32, message = "nqd,nkd->nqk"}> : () -> ()
    %cst_19 = arith.constant dense<0.000000e+00> : vector<4x8x8xf32>
    %25 = tpu.matmul %19, %23, %cst_19 {dimension_numbers = #tpu.dot_dimension_numbers<[2], [2], [1], [1], [0, 0, 0, 1, 1, 1], [0], [0]>} : vector<4x8x8xbf16>, vector<4x8x8xbf16>, vector<4x8x8xf32> -> vector<4x8x8xf32>
    "tpu.trace_stop"() : () -> ()
    %26 = vector.shape_cast %9 : vector<1x8xf32> to vector<1x1x8xf32>
    %27 = vector.broadcast %26 : vector<1x1x8xf32> to vector<4x8x8xf32>
    %28 = arith.addf %25, %27 : vector<4x8x8xf32>
    %cst_20 = arith.constant dense<0xFF800000> : vector<4x8xf32>
    %29 = vector.multi_reduction <maximumf>, %28, %cst_20 [2] : vector<4x8x8xf32> to vector<4x8xf32>
    %30 = vector.shape_cast %29 : vector<4x8xf32> to vector<4x8x1xf32>
    %31 = arith.maximumf %20, %30 : vector<4x8x1xf32>
    %32 = arith.subf %20, %31 : vector<4x8x1xf32>
    %33 = math.exp %32 : vector<4x8x1xf32>
    %34 = vector.broadcast %31 : vector<4x8x1xf32> to vector<4x8x8xf32>
    %35 = arith.subf %28, %34 : vector<4x8x8xf32>
    %36 = math.exp %35 : vector<4x8x8xf32>
    %37 = arith.mulf %33, %21 : vector<4x8x1xf32>
    %cst_21 = arith.constant dense<0.000000e+00> : vector<4x8xf32>
    %38 = vector.multi_reduction <add>, %36, %cst_21 [2] : vector<4x8x8xf32> to vector<4x8xf32>
    %39 = vector.shape_cast %38 : vector<4x8xf32> to vector<4x8x1xf32>
    %40 = arith.addf %37, %39 : vector<4x8x1xf32>
    %41 = vector.broadcast %33 : vector<4x8x1xf32> to vector<4x8x8xf32>
    %42 = arith.mulf %41, %22 : vector<4x8x8xf32>
    %43 = arith.truncf %36 : vector<4x8x8xf32> to vector<4x8x8xbf16>
    "tpu.trace_start"() <{level = 10 : i32, message = "nqk,nkd->nqd"}> : () -> ()
    %cst_22 = arith.constant dense<0.000000e+00> : vector<4x8x8xf32>
    %44 = tpu.matmul %43, %24, %cst_22 {dimension_numbers = #tpu.dot_dimension_numbers<[2], [1], [1], [2], [0, 0, 0, 1, 1, 2], [0], [0]>} : vector<4x8x8xbf16>, vector<4x8x8xbf16>, vector<4x8x8xf32> -> vector<4x8x8xf32>
    "tpu.trace_stop"() : () -> ()
    %45 = arith.addf %42, %44 : vector<4x8x8xf32>
    %46 = tpu.reciprocal %40 {approx = true} : vector<4x8x1xf32> -> vector<4x8x1xf32>
    %47 = vector.broadcast %46 : vector<4x8x1xf32> to vector<4x8x8xf32>
    %48 = arith.mulf %45, %47 : vector<4x8x8xf32>
    %49 = arith.truncf %48 : vector<4x8x8xf32> to vector<4x8x8xbf16>
    %50 = tpu.transpose %49, [1, 0, 2] : vector<4x8x8xbf16> -> vector<8x4x8xbf16>
    %51 = vector.shape_cast %50 : vector<8x4x8xbf16> to vector<8x32xbf16>
    %c0_23 = arith.constant 0 : index
    %c0_24 = arith.constant 0 : index
    %52 = vector.load %arg8[%c0_23, %c0_24] : memref<32x32xbf16, #tpu.memory_space<vmem>>, vector<32x32xbf16>
    %cst_25 = arith.constant dense<0.000000e+00> : vector<8x32xf32>
    %53 = tpu.matmul %51, %52, %cst_25 {dimension_numbers = #tpu.dot_dimension_numbers<[1], [0], [0], [1], [0, 0, 1, 1], [], []>} : vector<8x32xbf16>, vector<32x32xbf16>, vector<8x32xf32> -> vector<8x32xf32>
    %c0_26 = arith.constant 0 : index
    %c0_27 = arith.constant 0 : index
    %54 = vector.load %arg9[%c0_26, %c0_27] : memref<1x32xf32, #tpu.memory_space<vmem>>, vector<1x32xf32>
    %55 = vector.broadcast %54 : vector<1x32xf32> to vector<8x32xf32>
    %56 = arith.addf %53, %55 : vector<8x32xf32>
    %57 = arith.extf %7 : vector<8x32xbf16> to vector<8x32xf32>
    %58 = arith.addf %57, %56 : vector<8x32xf32>
    %c0_28 = arith.constant 0 : index
    %c0_29 = arith.constant 0 : index
    %59 = vector.load %arg10[%c0_28, %c0_29] : memref<1x32xf32, #tpu.memory_space<vmem>>, vector<1x32xf32>
    %c0_30 = arith.constant 0 : index
    %c0_31 = arith.constant 0 : index
    %60 = vector.load %arg11[%c0_30, %c0_31] : memref<1x32xf32, #tpu.memory_space<vmem>>, vector<1x32xf32>
    %cst_32 = arith.constant dense<0.000000e+00> : vector<8xf32>
    %61 = vector.multi_reduction <add>, %58, %cst_32 [1] : vector<8x32xf32> to vector<8xf32>
    %62 = vector.shape_cast %61 : vector<8xf32> to vector<8x1xf32>
    %cst_33 = arith.constant 3.200000e+01 : f32
    %63 = vector.broadcast %cst_33 : f32 to vector<8x1xf32>
    %64 = arith.divf %62, %63 : vector<8x1xf32>
    %65 = vector.broadcast %64 : vector<8x1xf32> to vector<8x32xf32>
    %66 = arith.subf %58, %65 : vector<8x32xf32>
    %67 = arith.mulf %66, %66 : vector<8x32xf32>
    %cst_34 = arith.constant dense<0.000000e+00> : vector<8xf32>
    %68 = vector.multi_reduction <add>, %67, %cst_34 [1] : vector<8x32xf32> to vector<8xf32>
    %69 = vector.shape_cast %68 : vector<8xf32> to vector<8x1xf32>
    %cst_35 = arith.constant 3.200000e+01 : f32
    %70 = vector.broadcast %cst_35 : f32 to vector<8x1xf32>
    %71 = arith.divf %69, %70 : vector<8x1xf32>
    %72 = vector.broadcast %64 : vector<8x1xf32> to vector<8x32xf32>
    %73 = arith.subf %58, %72 : vector<8x32xf32>
    %cst_36 = arith.constant 9.99999996E-13 : f32
    %74 = vector.broadcast %cst_36 : f32 to vector<8x1xf32>
    %75 = arith.addf %71, %74 : vector<8x1xf32>
    %76 = math.rsqrt %75 : vector<8x1xf32>
    %77 = vector.broadcast %76 : vector<8x1xf32> to vector<8x32xf32>
    %78 = arith.mulf %73, %77 : vector<8x32xf32>
    %79 = vector.broadcast %59 : vector<1x32xf32> to vector<8x32xf32>
    %80 = arith.mulf %78, %79 : vector<8x32xf32>
    %81 = vector.broadcast %60 : vector<1x32xf32> to vector<8x32xf32>
    %82 = arith.addf %80, %81 : vector<8x32xf32>
    %83 = arith.truncf %82 : vector<8x32xf32> to vector<8x32xbf16>
    %cst_37 = arith.constant 0.000000e+00 : f32
    %84 = vector.broadcast %cst_37 : f32 to vector<8x32xf32>
    %c0_38 = arith.constant 0 : index
    %c0_39 = arith.constant 0 : index
    %85 = vector.load %arg12[%c0_38, %c0_39] : memref<32x64xbf16, #tpu.memory_space<vmem>>, vector<32x64xbf16>
    %cst_40 = arith.constant dense<0.000000e+00> : vector<8x64xf32>
    %86 = tpu.matmul %83, %85, %cst_40 {dimension_numbers = #tpu.dot_dimension_numbers<[1], [0], [0], [1], [0, 0, 1, 1], [], []>} : vector<8x32xbf16>, vector<32x64xbf16>, vector<8x64xf32> -> vector<8x64xf32>
    %c0_41 = arith.constant 0 : index
    %c0_42 = arith.constant 0 : index
    %87 = vector.load %arg13[%c0_41, %c0_42] : memref<1x64xf32, #tpu.memory_space<vmem>>, vector<1x64xf32>
    %88 = vector.broadcast %87 : vector<1x64xf32> to vector<8x64xf32>
    %89 = arith.addf %86, %88 : vector<8x64xf32>
    %cst_43 = arith.constant 5.000000e-01 : f32
    %90 = vector.broadcast %cst_43 : f32 to vector<8x64xf32>
    %91 = arith.mulf %90, %89 : vector<8x64xf32>
    %cst_44 = arith.constant 4.471500e-02 : f32
    %92 = vector.broadcast %cst_44 : f32 to vector<8x64xf32>
    %93 = arith.mulf %92, %89 : vector<8x64xf32>
    %94 = arith.mulf %93, %89 : vector<8x64xf32>
    %95 = arith.mulf %94, %89 : vector<8x64xf32>
    %96 = arith.addf %89, %95 : vector<8x64xf32>
    %cst_45 = arith.constant 0.797884583 : f32
    %97 = vector.broadcast %cst_45 : f32 to vector<8x64xf32>
    %98 = arith.mulf %97, %96 : vector<8x64xf32>
    %99 = math.tanh %98 : vector<8x64xf32>
    %cst_46 = arith.constant 1.000000e+00 : f32
    %100 = vector.broadcast %cst_46 : f32 to vector<8x64xf32>
    %101 = arith.addf %100, %99 : vector<8x64xf32>
    %102 = arith.mulf %91, %101 : vector<8x64xf32>
    %103 = arith.truncf %102 : vector<8x64xf32> to vector<8x64xbf16>
    %c0_47 = arith.constant 0 : index
    %c0_48 = arith.constant 0 : index
    %104 = vector.load %arg14[%c0_47, %c0_48] : memref<64x32xbf16, #tpu.memory_space<vmem>>, vector<64x32xbf16>
    %cst_49 = arith.constant dense<0.000000e+00> : vector<8x32xf32>
    %105 = tpu.matmul %103, %104, %cst_49 {dimension_numbers = #tpu.dot_dimension_numbers<[1], [0], [0], [1], [0, 0, 1, 1], [], []>} : vector<8x64xbf16>, vector<64x32xbf16>, vector<8x32xf32> -> vector<8x32xf32>
    %106 = arith.addf %84, %105 : vector<8x32xf32>
    %c0_50 = arith.constant 0 : index
    %c0_51 = arith.constant 0 : index
    %107 = vector.load %arg15[%c0_50, %c0_51] : memref<1x32xf32, #tpu.memory_space<vmem>>, vector<1x32xf32>
    %108 = vector.broadcast %107 : vector<1x32xf32> to vector<8x32xf32>
    %109 = arith.addf %106, %108 : vector<8x32xf32>
    %110 = arith.addf %109, %82 : vector<8x32xf32>
    %c0_52 = arith.constant 0 : index
    %c0_53 = arith.constant 0 : index
    %111 = vector.load %arg16[%c0_52, %c0_53] : memref<1x32xf32, #tpu.memory_space<vmem>>, vector<1x32xf32>
    %c0_54 = arith.constant 0 : index
    %c0_55 = arith.constant 0 : index
    %112 = vector.load %arg17[%c0_54, %c0_55] : memref<1x32xf32, #tpu.memory_space<vmem>>, vector<1x32xf32>
    %cst_56 = arith.constant dense<0.000000e+00> : vector<8xf32>
    %113 = vector.multi_reduction <add>, %110, %cst_56 [1] : vector<8x32xf32> to vector<8xf32>
    %114 = vector.shape_cast %113 : vector<8xf32> to vector<8x1xf32>
    %cst_57 = arith.constant 3.200000e+01 : f32
    %115 = vector.broadcast %cst_57 : f32 to vector<8x1xf32>
    %116 = arith.divf %114, %115 : vector<8x1xf32>
    %117 = vector.broadcast %116 : vector<8x1xf32> to vector<8x32xf32>
    %118 = arith.subf %110, %117 : vector<8x32xf32>
    %119 = arith.mulf %118, %118 : vector<8x32xf32>
    %cst_58 = arith.constant dense<0.000000e+00> : vector<8xf32>
    %120 = vector.multi_reduction <add>, %119, %cst_58 [1] : vector<8x32xf32> to vector<8xf32>
    %121 = vector.shape_cast %120 : vector<8xf32> to vector<8x1xf32>
    %cst_59 = arith.constant 3.200000e+01 : f32
    %122 = vector.broadcast %cst_59 : f32 to vector<8x1xf32>
    %123 = arith.divf %121, %122 : vector<8x1xf32>
    %124 = vector.broadcast %116 : vector<8x1xf32> to vector<8x32xf32>
    %125 = arith.subf %110, %124 : vector<8x32xf32>
    %cst_60 = arith.constant 9.99999996E-13 : f32
    %126 = vector.broadcast %cst_60 : f32 to vector<8x1xf32>
    %127 = arith.addf %123, %126 : vector<8x1xf32>
    %128 = math.rsqrt %127 : vector<8x1xf32>
    %129 = vector.broadcast %128 : vector<8x1xf32> to vector<8x32xf32>
    %130 = arith.mulf %125, %129 : vector<8x32xf32>
    %131 = vector.broadcast %111 : vector<1x32xf32> to vector<8x32xf32>
    %132 = arith.mulf %130, %131 : vector<8x32xf32>
    %133 = vector.broadcast %112 : vector<1x32xf32> to vector<8x32xf32>
    %134 = arith.addf %132, %133 : vector<8x32xf32>
    %135 = arith.truncf %134 : vector<8x32xf32> to vector<8x32xbf16>
    %c0_61 = arith.constant 0 : index
    %c0_62 = arith.constant 0 : index
    %c0_63 = arith.constant 0 : index
    %136 = vector.load %arg18[%c0_61, %c0_62, %c0_63] : memref<1x8x32xbf16, #tpu.memory_space<vmem>>, vector<1x8x32xbf16>
    %137 = vector.shape_cast %136 : vector<1x8x32xbf16> to vector<8x32xbf16>
    %138 = vector.shape_cast %135 : vector<8x32xbf16> to vector<1x8x32xbf16>
    tpu.vector_store %arg18[%c0_61, %c0_62, %c0_63], %138 {strides = array<i32>} : memref<1x8x32xbf16, #tpu.memory_space<vmem>>, vector<1x8x32xbf16>,
    return
  }
  func.func @transform_0(%arg0: i32, %arg1: i32) -> (i32, i32, i32) {
    %c0_i32 = arith.constant 0 : i32
    %c0_i32_0 = arith.constant 0 : i32
    %c0_i32_1 = arith.constant 0 : i32
    return %arg0, %c0_i32, %c0_i32_0 : i32, i32, i32
  }
  func.func @transform_1(%arg0: i32, %arg1: i32) -> (i32, i32, i32) {
    %c0_i32 = arith.constant 0 : i32
    %c0_i32_0 = arith.constant 0 : i32
    %c0_i32_1 = arith.constant 0 : i32
    return %arg0, %c0_i32, %c0_i32_0 : i32, i32, i32
  }
  func.func @transform_2(%arg0: i32, %arg1: i32) -> (i32, i32) {
    %c0_i32 = arith.constant 0 : i32
    %c0_i32_0 = arith.constant 0 : i32
    %c0_i32_1 = arith.constant 0 : i32
    return %c0_i32, %c0_i32_0 : i32, i32
  }
  func.func @transform_3(%arg0: i32, %arg1: i32) -> (i32, i32) {
    %c0_i32 = arith.constant 0 : i32
    %c0_i32_0 = arith.constant 0 : i32
    %c0_i32_1 = arith.constant 0 : i32
    return %c0_i32, %c0_i32_0 : i32, i32
  }
  func.func @transform_4(%arg0: i32, %arg1: i32) -> (i32, i32) {
    %c0_i32 = arith.constant 0 : i32
    %c0_i32_0 = arith.constant 0 : i32
    %c0_i32_1 = arith.constant 0 : i32
    return %c0_i32, %c0_i32_0 : i32, i32
  }
  func.func @transform_5(%arg0: i32, %arg1: i32) -> (i32, i32) {
    %c0_i32 = arith.constant 0 : i32
    %c0_i32_0 = arith.constant 0 : i32
    %c0_i32_1 = arith.constant 0 : i32
    return %c0_i32, %c0_i32_0 : i32, i32
  }
  func.func @transform_6(%arg0: i32, %arg1: i32) -> (i32, i32) {
    %c0_i32 = arith.constant 0 : i32
    %c0_i32_0 = arith.constant 0 : i32
    %c0_i32_1 = arith.constant 0 : i32
    return %c0_i32, %c0_i32_0 : i32, i32
  }
  func.func @transform_7(%arg0: i32, %arg1: i32) -> (i32, i32) {
    %c0_i32 = arith.constant 0 : i32
    %c0_i32_0 = arith.constant 0 : i32
    %c0_i32_1 = arith.constant 0 : i32
    return %c0_i32, %c0_i32_0 : i32, i32
  }
  func.func @transform_8(%arg0: i32, %arg1: i32) -> (i32, i32) {
    %c0_i32 = arith.constant 0 : i32
    %c0_i32_0 = arith.constant 0 : i32
    %c0_i32_1 = arith.constant 0 : i32
    return %c0_i32, %c0_i32_0 : i32, i32
  }
  func.func @transform_9(%arg0: i32, %arg1: i32) -> (i32, i32) {
    %c0_i32 = arith.constant 0 : i32
    %c0_i32_0 = arith.constant 0 : i32
    %c0_i32_1 = arith.constant 0 : i32
    return %c0_i32, %c0_i32_0 : i32, i32
  }
  func.func @transform_10(%arg0: i32, %arg1: i32) -> (i32, i32) {
    %c0_i32 = arith.constant 0 : i32
    %c0_i32_0 = arith.constant 0 : i32
    %c0_i32_1 = arith.constant 0 : i32
    return %c0_i32, %c0_i32_0 : i32, i32
  }
  func.func @transform_11(%arg0: i32, %arg1: i32) -> (i32, i32) {
    %c0_i32 = arith.constant 0 : i32
    %c0_i32_0 = arith.constant 0 : i32
    %c0_i32_1 = arith.constant 0 : i32
    return %c0_i32, %c0_i32_0 : i32, i32
  }
  func.func @transform_12(%arg0: i32, %arg1: i32) -> (i32, i32) {
    %c0_i32 = arith.constant 0 : i32
    %c0_i32_0 = arith.constant 0 : i32
    %c0_i32_1 = arith.constant 0 : i32
    return %c0_i32, %c0_i32_0 : i32, i32
  }
  func.func @transform_13(%arg0: i32, %arg1: i32) -> (i32, i32) {
    %c0_i32 = arith.constant 0 : i32
    %c0_i32_0 = arith.constant 0 : i32
    %c0_i32_1 = arith.constant 0 : i32
    return %c0_i32, %c0_i32_0 : i32, i32
  }
  func.func @transform_14(%arg0: i32, %arg1: i32) -> (i32, i32) {
    %c0_i32 = arith.constant 0 : i32
    %c0_i32_0 = arith.constant 0 : i32
    %c0_i32_1 = arith.constant 0 : i32
    return %c0_i32, %c0_i32_0 : i32, i32
  }
  func.func @transform_15(%arg0: i32, %arg1: i32) -> (i32, i32) {
    %c0_i32 = arith.constant 0 : i32
    %c0_i32_0 = arith.constant 0 : i32
    %c0_i32_1 = arith.constant 0 : i32
    return %c0_i32, %c0_i32_0 : i32, i32
  }
  func.func @transform_16(%arg0: i32, %arg1: i32) -> (i32, i32, i32) {
    %c0_i32 = arith.constant 0 : i32
    %c0_i32_0 = arith.constant 0 : i32
    return %arg0, %arg1, %c0_i32 : i32, i32, i32
  }
}

</mosaic_0001>

<llo_original>
// kernel: tpu_custom_call.1
$region0: #{tpu_custom_call.1}
  #allocation0 [shape = 'u32[]', space=smem, size = 0x4, offset = 0x4, fixed_abs, tag = 'smem constant byte address 0x4 - core index']
  #allocation1 [shape = 'u32[144,128]{1,0:T(1,128)}', space=vmem, size = 0x12000, scoped, tag = 'internal scratch']
  #allocation2 [shape = 'bf16[4,8,8]{2,1,0:T(8,128)(2,1)}', space=vmem, size = 0x2000, scoped, tag = 'scratch operand']
  #allocation3 [shape = 'bf16[4,8,8]{2,1,0:T(8,128)(2,1)}', space=vmem, size = 0x2000, scoped, tag = 'scratch operand']
  %s0 = inlined_call_operand.hbm [shape: bf16[2,8,32], index: 0, kind: input, shape index: {}]
  %s1 = inlined_call_operand.hbm [shape: f32[2,1,8], index: 1, kind: input, shape index: {}]
  %s2 = inlined_call_operand.vmem [shape: bf16[32,32], index: 2, kind: input, shape index: {}]
  %s3 = inlined_call_operand.vmem [shape: f32[1,32], index: 3, kind: input, shape index: {}]
  %s4 = inlined_call_operand.vmem [shape: bf16[32,64], index: 4, kind: input, shape index: {}]
  %s5 = inlined_call_operand.vmem [shape: f32[1,64], index: 5, kind: input, shape index: {}]
  %s6 = inlined_call_operand.vmem [shape: bf16[32,32], index: 6, kind: input, shape index: {}]
  %s7 = inlined_call_operand.vmem [shape: f32[1,32], index: 7, kind: input, shape index: {}]
  %s8 = inlined_call_operand.vmem [shape: f32[1,32], index: 8, kind: input, shape index: {}]
  %s9 = inlined_call_operand.vmem [shape: f32[1,32], index: 9, kind: input, shape index: {}]
  %s10 = inlined_call_operand.hbm [shape: bf16[32,64], index: 10, kind: input, shape index: {}]
  %s11 = inlined_call_operand.hbm [shape: f32[1,64], index: 11, kind: input, shape index: {}]
  %s12 = inlined_call_operand.vmem [shape: bf16[64,32], index: 12, kind: input, shape index: {}]
  %s13 = inlined_call_operand.vmem [shape: f32[1,32], index: 13, kind: input, shape index: {}]
  %s14 = inlined_call_operand.vmem [shape: f32[1,32], index: 14, kind: input, shape index: {}]
  %s15 = inlined_call_operand.vmem [shape: f32[1,32], index: 15, kind: input, shape index: {}]
  %s16 = inlined_call_operand.hbm [shape: bf16[2,8,32], index: 16, kind: output, shape index: {}]
  %s17 = sld [smem:[#allocation0]]
  $region117: #{tpu_custom_call.1} parent=0
    _
  %s19 = ssub.s32 1, %s17
  %s20 = scalar_select 0, %s19, %s17
  $region1: #{tpu_custom_call.1} parent=0
    #allocation4 [shape = 'u8[2048]{0}', space=vmem, size = 0x800, scoped, tag = 'input window, operand 0, single buffered']
    #allocation5 [shape = 's32[2]{0}', space=sflag, size = 0x8, scoped, tag = 'scoped memory for tpu_custom_call.1']
    #allocation6 [shape = 's32[2]{0}', space=sflag, size = 0x8, scoped, tag = 'scoped memory for tpu_custom_call.1']
    #allocation7 [shape = 'u8[1024]{0}', space=vmem, size = 0x400, scoped, tag = 'input window, operand 1']
    #allocation8 [shape = 's32[2]{0}', space=sflag, size = 0x8, scoped, tag = 'scoped memory for tpu_custom_call.1']
    #allocation9 [shape = 'u8[8192]{0}', space=vmem, size = 0x2000, scoped, tag = 'input window, operand 10, single buffered']
    #allocation10 [shape = 'u8[512]{0}', space=vmem, size = 0x400, scoped, tag = 'input window, operand 11, single buffered']
    #allocation11 [shape = 's32[1]{0}', space=sflag, size = 0x4, scoped, tag = 'scoped memory for tpu_custom_call.1']
    #allocation12 [shape = 'u8[4096]{0}', space=vmem, size = 0x1000, scoped, tag = 'output window, operand 0']
    %21 = vsyncpa [#allocation5], 0
    %22 = vsyncpa [#allocation8], 0
    %s23 = scalar_lea.sflag [#allocation8], 1
    %24 = vsyncpa %s23, 0
    %25 = vsyncpa [#allocation11], 0
    %26 = vsyncpa [#allocation6], 0
    %s27 = scalar_lea.sflag [#allocation6], 1
    %28 = vsyncpa %s27, 0
    loop: start=0, step=1, limit=4
    $region2: #{tpu_custom_call.1} parent=1 // loop_pre_header
      _
    $region3: #{tpu_custom_call.1} parent=1 // loop_header
      %s30 = sphi 0, %s34
      %p31 = scmp.ge.s32.totalorder %s30, 4
      %s37 = sphi 0, %s49
      %s38 = sphi 0, %s45
      %s39 = sphi 0, %s37
      %s40 = sphi 0, %s38
      %s41 = sphi 0, %s39
      %s42 = sphi 0, %s40
      %s52 = sphi 0, %s54
      %s55 = sphi 0, %s52
      %s56 = sphi 0, %s55
      %s72 = sphi 0, %s56
      %s78 = sphi 0, %s80
      %s81 = sphi 0, %s78
      %s82 = sphi 0, %s81
      %s98 = sphi 0, %s82
      %s102 = sphi 0, %s102
      %s104 = sphi 0, %s102
      %s105 = sphi 0, %s104
      %s119 = sphi 0, %s105
      %s123 = sphi 0, %s123
      %s125 = sphi 0, %s123
      %s126 = sphi 0, %s125
      %s140 = sphi 0, %s126
      %s144 = sphi 0, %s144
      %s146 = sphi 0, %s144
      %s147 = sphi 0, %s146
      %s161 = sphi 0, %s147
      %s165 = sphi 0, %s165
      %s167 = sphi 0, %s165
      %s168 = sphi 0, %s167
      %s182 = sphi 0, %s168
      %s186 = sphi 0, %s186
      %s188 = sphi 0, %s186
      %s189 = sphi 0, %s188
      %s203 = sphi 0, %s189
      %s207 = sphi 0, %s207
      %s209 = sphi 0, %s207
      %s210 = sphi 0, %s209
      %s224 = sphi 0, %s210
      %s228 = sphi 0, %s228
      %s230 = sphi 0, %s228
      %s231 = sphi 0, %s230
      %s245 = sphi 0, %s231
      %s249 = sphi 0, %s249
      %s251 = sphi 0, %s249
      %s252 = sphi 0, %s251
      %s266 = sphi 0, %s252
      %s270 = sphi 0, %s270
      %s272 = sphi 0, %s270
      %s273 = sphi 0, %s272
      %s287 = sphi 0, %s273
      %s291 = sphi 0, %s291
      %s293 = sphi 0, %s291
      %s294 = sphi 0, %s293
      %s308 = sphi 0, %s294
      %s312 = sphi 0, %s312
      %s314 = sphi 0, %s312
      %s315 = sphi 0, %s314
      %s329 = sphi 0, %s315
      %s333 = sphi 0, %s333
      %s335 = sphi 0, %s333
      %s336 = sphi 0, %s335
      %s350 = sphi 0, %s336
      %s354 = sphi 0, %s354
      %s356 = sphi 0, %s354
      %s357 = sphi 0, %s356
      %s371 = sphi 0, %s357
      %s375 = sphi 0, %s375
      %s377 = sphi 0, %s375
      %s378 = sphi 0, %s377
      %s392 = sphi 0, %s378
      %s400 = sphi 0, %s402
      %s403 = sphi 0, %s400
      %s404 = sphi 0, %s403
      %s420 = sphi 0, %s404
    $region4: #{tpu_custom_call.1} parent=1 // loop_header_branch
      %33 = sbr.rel (%p31) target = $region8
    $region5: #{tpu_custom_call.1} parent=1 // loop_body
      %s35 = ssub.s32 %s30, 1
      %s36 = ssub.s32 %s30, 2
      %s43 = sadd.s32 1, %s38
      %p44 = scmp.ge.s32.totalorder %s43, 1
      %s45 = scalar_select %p44, 0, %s43
      %s46 = sadd.s32 1, %s37
      %s47 = scalar_select %p44, %s46, %s37
      %p48 = scmp.ge.s32.totalorder %s47, 2
      %s49 = scalar_select %p48, 0, %s47
      %s50 = ssub.s32 %s37, %s49
      %p51 = scmp.eq.s32.totalorder %s50, 0
      %s53 = sadd.s32 %s52, 1
      %s54 = scalar_select %p51, %s52, %s53
      %p57 = pneg %p51
      %p58 = scmp.eq.s32.totalorder %s30, 1
      %p59 = por %p57, %p58
      %p60 = scmp.ne.s32.totalorder %s52, %s55
      %p61 = scmp.eq.s32.totalorder %s30, 0
      %p62 = por %p60, %p61
      %p63 = scmp.ne.s32.totalorder %s52, %s55
      %p64 = scmp.eq.s32.totalorder %s35, 1
      %p65 = por %p63, %p64
      %p66 = scmp.ne.s32.totalorder %s55, %s56
      %p67 = scmp.eq.s32.totalorder %s35, 0
      %p68 = por %p66, %p67
      %p69 = scmp.ne.s32.totalorder %s55, %s56
      %p70 = scmp.eq.s32.totalorder %s36, 1
      %p71 = por %p69, %p70
      %p73 = scmp.ne.s32.totalorder %s56, %s72
      %p74 = scmp.eq.s32.totalorder %s36, 0
      %p75 = por %p73, %p74
      %s76 = ssub.s32 %s37, %s49
      %p77 = scmp.eq.s32.totalorder %s76, 0
      %s79 = sadd.s32 %s78, 1
      %s80 = scalar_select %p77, %s78, %s79
      %p83 = pneg %p77
      %p84 = scmp.eq.s32.totalorder %s30, 1
      %p85 = por %p83, %p84
      %p86 = scmp.ne.s32.totalorder %s78, %s81
      %p87 = scmp.eq.s32.totalorder %s30, 0
      %p88 = por %p86, %p87
      %p89 = scmp.ne.s32.totalorder %s78, %s81
      %p90 = scmp.eq.s32.totalorder %s35, 1
      %p91 = por %p89, %p90
      %p92 = scmp.ne.s32.totalorder %s81, %s82
      %p93 = scmp.eq.s32.totalorder %s35, 0
      %p94 = por %p92, %p93
      %p95 = scmp.ne.s32.totalorder %s81, %s82
      %p96 = scmp.eq.s32.totalorder %s36, 1
      %p97 = por %p95, %p96
      %p99 = scmp.ne.s32.totalorder %s82, %s98
      %p100 = scmp.eq.s32.totalorder %s36, 0
      %p101 = por %p99, %p100
      %s103 = sadd.s32 %s102, 1
      %p106 = scmp.eq.s32.totalorder %s30, 1
      %p107 = scmp.ne.s32.totalorder %s102, %s104
      %p108 = scmp.eq.s32.totalorder %s30, 0
      %p109 = por %p107, %p108
      %p110 = scmp.ne.s32.totalorder %s102, %s104
      %p111 = scmp.eq.s32.totalorder %s35, 1
      %p112 = por %p110, %p111
      %p113 = scmp.ne.s32.totalorder %s104, %s105
      %p114 = scmp.eq.s32.totalorder %s35, 0
      %p115 = por %p113, %p114
      %p116 = scmp.ne.s32.totalorder %s104, %s105
      %p117 = scmp.eq.s32.totalorder %s36, 1
      %p118 = por %p116, %p117
      %p120 = scmp.ne.s32.totalorder %s105, %s119
      %p121 = scmp.eq.s32.totalorder %s36, 0
      %p122 = por %p120, %p121
      %s124 = sadd.s32 %s123, 1
      %p127 = scmp.eq.s32.totalorder %s30, 1
      %p128 = scmp.ne.s32.totalorder %s123, %s125
      %p129 = scmp.eq.s32.totalorder %s30, 0
      %p130 = por %p128, %p129
      %p131 = scmp.ne.s32.totalorder %s123, %s125
      %p132 = scmp.eq.s32.totalorder %s35, 1
      %p133 = por %p131, %p132
      %p134 = scmp.ne.s32.totalorder %s125, %s126
      %p135 = scmp.eq.s32.totalorder %s35, 0
      %p136 = por %p134, %p135
      %p137 = scmp.ne.s32.totalorder %s125, %s126
      %p138 = scmp.eq.s32.totalorder %s36, 1
      %p139 = por %p137, %p138
      %p141 = scmp.ne.s32.totalorder %s126, %s140
      %p142 = scmp.eq.s32.totalorder %s36, 0
      %p143 = por %p141, %p142
      %s145 = sadd.s32 %s144, 1
      %p148 = scmp.eq.s32.totalorder %s30, 1
      %p149 = scmp.ne.s32.totalorder %s144, %s146
      %p150 = scmp.eq.s32.totalorder %s30, 0
      %p151 = por %p149, %p150
      %p152 = scmp.ne.s32.totalorder %s144, %s146
      %p153 = scmp.eq.s32.totalorder %s35, 1
      %p154 = por %p152, %p153
      %p155 = scmp.ne.s32.totalorder %s146, %s147
      %p156 = scmp.eq.s32.totalorder %s35, 0
      %p157 = por %p155, %p156
      %p158 = scmp.ne.s32.totalorder %s146, %s147
      %p159 = scmp.eq.s32.totalorder %s36, 1
      %p160 = por %p158, %p159
      %p162 = scmp.ne.s32.totalorder %s147, %s161
      %p163 = scmp.eq.s32.totalorder %s36, 0
      %p164 = por %p162, %p163
      %s166 = sadd.s32 %s165, 1
      %p169 = scmp.eq.s32.totalorder %s30, 1
      %p170 = scmp.ne.s32.totalorder %s165, %s167
      %p171 = scmp.eq.s32.totalorder %s30, 0
      %p172 = por %p170, %p171
      %p173 = scmp.ne.s32.totalorder %s165, %s167
      %p174 = scmp.eq.s32.totalorder %s35, 1
      %p175 = por %p173, %p174
      %p176 = scmp.ne.s32.totalorder %s167, %s168
      %p177 = scmp.eq.s32.totalorder %s35, 0
      %p178 = por %p176, %p177
      %p179 = scmp.ne.s32.totalorder %s167, %s168
      %p180 = scmp.eq.s32.totalorder %s36, 1
      %p181 = por %p179, %p180
      %p183 = scmp.ne.s32.totalorder %s168, %s182
      %p184 = scmp.eq.s32.totalorder %s36, 0
      %p185 = por %p183, %p184
      %s187 = sadd.s32 %s186, 1
      %p190 = scmp.eq.s32.totalorder %s30, 1
      %p191 = scmp.ne.s32.totalorder %s186, %s188
      %p192 = scmp.eq.s32.totalorder %s30, 0
      %p193 = por %p191, %p192
      %p194 = scmp.ne.s32.totalorder %s186, %s188
      %p195 = scmp.eq.s32.totalorder %s35, 1
      %p196 = por %p194, %p195
      %p197 = scmp.ne.s32.totalorder %s188, %s189
      %p198 = scmp.eq.s32.totalorder %s35, 0
      %p199 = por %p197, %p198
      %p200 = scmp.ne.s32.totalorder %s188, %s189
      %p201 = scmp.eq.s32.totalorder %s36, 1
      %p202 = por %p200, %p201
      %p204 = scmp.ne.s32.totalorder %s189, %s203
      %p205 = scmp.eq.s32.totalorder %s36, 0
      %p206 = por %p204, %p205
      %s208 = sadd.s32 %s207, 1
      %p211 = scmp.eq.s32.totalorder %s30, 1
      %p212 = scmp.ne.s32.totalorder %s207, %s209
      %p213 = scmp.eq.s32.totalorder %s30, 0
      %p214 = por %p212, %p213
      %p215 = scmp.ne.s32.totalorder %s207, %s209
      %p216 = scmp.eq.s32.totalorder %s35, 1
      %p217 = por %p215, %p216
      %p218 = scmp.ne.s32.totalorder %s209, %s210
      %p219 = scmp.eq.s32.totalorder %s35, 0
      %p220 = por %p218, %p219
      %p221 = scmp.ne.s32.totalorder %s209, %s210
      %p222 = scmp.eq.s32.totalorder %s36, 1
      %p223 = por %p221, %p222
      %p225 = scmp.ne.s32.totalorder %s210, %s224
      %p226 = scmp.eq.s32.totalorder %s36, 0
      %p227 = por %p225, %p226
      %s229 = sadd.s32 %s228, 1
      %p232 = scmp.eq.s32.totalorder %s30, 1
      %p233 = scmp.ne.s32.totalorder %s228, %s230
      %p234 = scmp.eq.s32.totalorder %s30, 0
      %p235 = por %p233, %p234
      %p236 = scmp.ne.s32.totalorder %s228, %s230
      %p237 = scmp.eq.s32.totalorder %s35, 1
      %p238 = por %p236, %p237
      %p239 = scmp.ne.s32.totalorder %s230, %s231
      %p240 = scmp.eq.s32.totalorder %s35, 0
      %p241 = por %p239, %p240
      %p242 = scmp.ne.s32.totalorder %s230, %s231
      %p243 = scmp.eq.s32.totalorder %s36, 1
      %p244 = por %p242, %p243
      %p246 = scmp.ne.s32.totalorder %s231, %s245
      %p247 = scmp.eq.s32.totalorder %s36, 0
      %p248 = por %p246, %p247
      %s250 = sadd.s32 %s249, 1
      %p253 = scmp.eq.s32.totalorder %s30, 1
      %p254 = scmp.ne.s32.totalorder %s249, %s251
      %p255 = scmp.eq.s32.totalorder %s30, 0
      %p256 = por %p254, %p255
      %p257 = scmp.ne.s32.totalorder %s249, %s251
      %p258 = scmp.eq.s32.totalorder %s35, 1
      %p259 = por %p257, %p258
      %p260 = scmp.ne.s32.totalorder %s251, %s252
      %p261 = scmp.eq.s32.totalorder %s35, 0
      %p262 = por %p260, %p261
      %p263 = scmp.ne.s32.totalorder %s251, %s252
      %p264 = scmp.eq.s32.totalorder %s36, 1
      %p265 = por %p263, %p264
      %p267 = scmp.ne.s32.totalorder %s252, %s266
      %p268 = scmp.eq.s32.totalorder %s36, 0
      %p269 = por %p267, %p268
      %s271 = sadd.s32 %s270, 1
      %p274 = scmp.eq.s32.totalorder %s30, 1
      %p275 = scmp.ne.s32.totalorder %s270, %s272
      %p276 = scmp.eq.s32.totalorder %s30, 0
      %p277 = por %p275, %p276
      %p278 = scmp.ne.s32.totalorder %s270, %s272
      %p279 = scmp.eq.s32.totalorder %s35, 1
      %p280 = por %p278, %p279
      %p281 = scmp.ne.s32.totalorder %s272, %s273
      %p282 = scmp.eq.s32.totalorder %s35, 0
      %p283 = por %p281, %p282
      %p284 = scmp.ne.s32.totalorder %s272, %s273
      %p285 = scmp.eq.s32.totalorder %s36, 1
      %p286 = por %p284, %p285
      %p288 = scmp.ne.s32.totalorder %s273, %s287
      %p289 = scmp.eq.s32.totalorder %s36, 0
      %p290 = por %p288, %p289
      %s292 = sadd.s32 %s291, 1
      %p295 = scmp.eq.s32.totalorder %s30, 1
      %p296 = scmp.ne.s32.totalorder %s291, %s293
      %p297 = scmp.eq.s32.totalorder %s30, 0
      %p298 = por %p296, %p297
      %p299 = scmp.ne.s32.totalorder %s291, %s293
      %p300 = scmp.eq.s32.totalorder %s35, 1
      %p301 = por %p299, %p300
      %p302 = scmp.ne.s32.totalorder %s293, %s294
      %p303 = scmp.eq.s32.totalorder %s35, 0
      %p304 = por %p302, %p303
      %p305 = scmp.ne.s32.totalorder %s293, %s294
      %p306 = scmp.eq.s32.totalorder %s36, 1
      %p307 = por %p305, %p306
      %p309 = scmp.ne.s32.totalorder %s294, %s308
      %p310 = scmp.eq.s32.totalorder %s36, 0
      %p311 = por %p309, %p310
      %s313 = sadd.s32 %s312, 1
      %p316 = scmp.eq.s32.totalorder %s30, 1
      %p317 = scmp.ne.s32.totalorder %s312, %s314
      %p318 = scmp.eq.s32.totalorder %s30, 0
      %p319 = por %p317, %p318
      %p320 = scmp.ne.s32.totalorder %s312, %s314
      %p321 = scmp.eq.s32.totalorder %s35, 1
      %p322 = por %p320, %p321
      %p323 = scmp.ne.s32.totalorder %s314, %s315
      %p324 = scmp.eq.s32.totalorder %s35, 0
      %p325 = por %p323, %p324
      %p326 = scmp.ne.s32.totalorder %s314, %s315
      %p327 = scmp.eq.s32.totalorder %s36, 1
      %p328 = por %p326, %p327
      %p330 = scmp.ne.s32.totalorder %s315, %s329
      %p331 = scmp.eq.s32.totalorder %s36, 0
      %p332 = por %p330, %p331
      %s334 = sadd.s32 %s333, 1
      %p337 = scmp.eq.s32.totalorder %s30, 1
      %p338 = scmp.ne.s32.totalorder %s333, %s335
      %p339 = scmp.eq.s32.totalorder %s30, 0
      %p340 = por %p338, %p339
      %p341 = scmp.ne.s32.totalorder %s333, %s335
      %p342 = scmp.eq.s32.totalorder %s35, 1
      %p343 = por %p341, %p342
      %p344 = scmp.ne.s32.totalorder %s335, %s336
      %p345 = scmp.eq.s32.totalorder %s35, 0
      %p346 = por %p344, %p345
      %p347 = scmp.ne.s32.totalorder %s335, %s336
      %p348 = scmp.eq.s32.totalorder %s36, 1
      %p349 = por %p347, %p348
      %p351 = scmp.ne.s32.totalorder %s336, %s350
      %p352 = scmp.eq.s32.totalorder %s36, 0
      %p353 = por %p351, %p352
      %s355 = sadd.s32 %s354, 1
      %p358 = scmp.eq.s32.totalorder %s30, 1
      %p359 = scmp.ne.s32.totalorder %s354, %s356
      %p360 = scmp.eq.s32.totalorder %s30, 0
      %p361 = por %p359, %p360
      %p362 = scmp.ne.s32.totalorder %s354, %s356
      %p363 = scmp.eq.s32.totalorder %s35, 1
      %p364 = por %p362, %p363
      %p365 = scmp.ne.s32.totalorder %s356, %s357
      %p366 = scmp.eq.s32.totalorder %s35, 0
      %p367 = por %p365, %p366
      %p368 = scmp.ne.s32.totalorder %s356, %s357
      %p369 = scmp.eq.s32.totalorder %s36, 1
      %p370 = por %p368, %p369
      %p372 = scmp.ne.s32.totalorder %s357, %s371
      %p373 = scmp.eq.s32.totalorder %s36, 0
      %p374 = por %p372, %p373
      %s376 = sadd.s32 %s375, 1
      %p379 = scmp.eq.s32.totalorder %s30, 1
      %p380 = scmp.ne.s32.totalorder %s375, %s377
      %p381 = scmp.eq.s32.totalorder %s30, 0
      %p382 = por %p380, %p381
      %p383 = scmp.ne.s32.totalorder %s375, %s377
      %p384 = scmp.eq.s32.totalorder %s35, 1
      %p385 = por %p383, %p384
      %p386 = scmp.ne.s32.totalorder %s377, %s378
      %p387 = scmp.eq.s32.totalorder %s35, 0
      %p388 = por %p386, %p387
      %p389 = scmp.ne.s32.totalorder %s377, %s378
      %p390 = scmp.eq.s32.totalorder %s36, 1
      %p391 = por %p389, %p390
      %p393 = scmp.ne.s32.totalorder %s378, %s392
      %p394 = scmp.eq.s32.totalorder %s36, 0
      %p395 = por %p393, %p394
      %s396 = ssub.s32 %s37, %s49
      %s397 = ssub.s32 %s38, %s45
      %s398 = sor.u32 %s396, %s397
      %p399 = scmp.eq.s32.totalorder %s398, 0
      %s401 = sadd.s32 %s400, 1
      %s402 = scalar_select %p399, %s400, %s401
      %p405 = pneg %p399
      %p406 = scmp.eq.s32.totalorder %s30, 1
      %p407 = por %p405, %p406
      %p408 = scmp.ne.s32.totalorder %s400, %s403
      %p409 = scmp.eq.s32.totalorder %s30, 0
      %p410 = por %p408, %p409
      %p411 = scmp.ne.s32.totalorder %s400, %s403
      %p412 = scmp.eq.s32.totalorder %s35, 1
      %p413 = por %p411, %p412
      %p414 = scmp.ne.s32.totalorder %s403, %s404
      %p415 = scmp.eq.s32.totalorder %s35, 0
      %p416 = por %p414, %p415
      %p417 = scmp.ne.s32.totalorder %s403, %s404
      %p418 = scmp.eq.s32.totalorder %s36, 1
      %p419 = por %p417, %p418
      %p421 = scmp.ne.s32.totalorder %s404, %s420
      %p422 = scmp.eq.s32.totalorder %s36, 0
      %p423 = por %p421, %p422
      %p424 = scmp.le.s32.totalorder 1, %s30
      %p425 = scmp.lt.s32.totalorder %s30, 3
      %p426 = pnand %p424, %p425
      %p427 = pneg %p426
      // Predicated region
      $region9: #{tpu_custom_call.1} parent=5 // pred_check
        _
      $region10: #{tpu_custom_call.1} parent=5 // pred_check_branch
        %429 = sbr.rel (%p426) target = $region12
      $region11: #{tpu_custom_call.1} parent=5 // pred_region
        %s430 = ssub.s32 %s30, 1
        // Predicated region
        $region13: #{tpu_custom_call.1} parent=11 // pred_check
          %p431 = pneg %p68
        $region14: #{tpu_custom_call.1} parent=11 // pred_check_branch
          %433 = sbr.rel (%p431) target = $region16
        $region15: #{tpu_custom_call.1} parent=11 // pred_region
          %s435 = ssub.s32 64, 64
          %436 = vsyncadd [#allocation5], %s435
          %s437 = smul.addr %s39, 64
          %s438 = scalar_lea.hbm %s0, %s437
          %s440 = sshll.u32 [#allocation4], 4
          %s441 = int_to_ptr.vmem [resolvable:$true] %s440
          %443 = dma.hbm_to_vmem [thread:$0]  %s438, 64, %s441, [#allocation5]
        $region16: #{tpu_custom_call.1} parent=11 // pred_fallthru
          _
        // Predicated region
        $region17: #{tpu_custom_call.1} parent=11 // pred_check
          %p444 = pneg %p115
        $region18: #{tpu_custom_call.1} parent=11 // pred_check_branch
          %446 = sbr.rel (%p444) target = $region20
        $region19: #{tpu_custom_call.1} parent=11 // pred_region
          _
        $region20: #{tpu_custom_call.1} parent=11 // pred_fallthru
          _
        // Predicated region
        $region21: #{tpu_custom_call.1} parent=11 // pred_check
          %p447 = pneg %p136
        $region22: #{tpu_custom_call.1} parent=11 // pred_check_branch
          %449 = sbr.rel (%p447) target = $region24
        $region23: #{tpu_custom_call.1} parent=11 // pred_region
          _
        $region24: #{tpu_custom_call.1} parent=11 // pred_fallthru
          _
        // Predicated region
        $region25: #{tpu_custom_call.1} parent=11 // pred_check
          %p450 = pneg %p157
        $region26: #{tpu_custom_call.1} parent=11 // pred_check_branch
          %452 = sbr.rel (%p450) target = $region28
        $region27: #{tpu_custom_call.1} parent=11 // pred_region
          _
        $region28: #{tpu_custom_call.1} parent=11 // pred_fallthru
          _
        // Predicated region
        $region29: #{tpu_custom_call.1} parent=11 // pred_check
          %p453 = pneg %p178
        $region30: #{tpu_custom_call.1} parent=11 // pred_check_branch
          %455 = sbr.rel (%p453) target = $region32
        $region31: #{tpu_custom_call.1} parent=11 // pred_region
          _
        $region32: #{tpu_custom_call.1} parent=11 // pred_fallthru
          _
        // Predicated region
        $region33: #{tpu_custom_call.1} parent=11 // pred_check
          %p456 = pneg %p199
        $region34: #{tpu_custom_call.1} parent=11 // pred_check_branch
          %458 = sbr.rel (%p456) target = $region36
        $region35: #{tpu_custom_call.1} parent=11 // pred_region
          _
        $region36: #{tpu_custom_call.1} parent=11 // pred_fallthru
          _
        // Predicated region
        $region37: #{tpu_custom_call.1} parent=11 // pred_check
          %p459 = pneg %p220
        $region38: #{tpu_custom_call.1} parent=11 // pred_check_branch
          %461 = sbr.rel (%p459) target = $region40
        $region39: #{tpu_custom_call.1} parent=11 // pred_region
          _
        $region40: #{tpu_custom_call.1} parent=11 // pred_fallthru
          _
        // Predicated region
        $region41: #{tpu_custom_call.1} parent=11 // pred_check
          %p462 = pneg %p241
        $region42: #{tpu_custom_call.1} parent=11 // pred_check_branch
          %464 = sbr.rel (%p462) target = $region44
        $region43: #{tpu_custom_call.1} parent=11 // pred_region
          _
        $region44: #{tpu_custom_call.1} parent=11 // pred_fallthru
          _
        // Predicated region
        $region45: #{tpu_custom_call.1} parent=11 // pred_check
          %p465 = pneg %p262
        $region46: #{tpu_custom_call.1} parent=11 // pred_check_branch
          %467 = sbr.rel (%p465) target = $region48
        $region47: #{tpu_custom_call.1} parent=11 // pred_region
          _
        $region48: #{tpu_custom_call.1} parent=11 // pred_fallthru
          _
        // Predicated region
        $region49: #{tpu_custom_call.1} parent=11 // pred_check
          %p468 = pneg %p283
        $region50: #{tpu_custom_call.1} parent=11 // pred_check_branch
          %470 = sbr.rel (%p468) target = $region52
        $region51: #{tpu_custom_call.1} parent=11 // pred_region
          %s472 = ssub.s32 256, 256
          %473 = vsyncadd [#allocation8], %s472
          %s474 = sshll.u32 [#allocation9], 4
          %s475 = int_to_ptr.vmem [resolvable:$true] %s474
          %480 = dma.hbm_to_vmem [thread:$0]  %s10, 256, %s475, [#allocation8], 64, 64, 4
        $region52: #{tpu_custom_call.1} parent=11 // pred_fallthru
          _
        // Predicated region
        $region53: #{tpu_custom_call.1} parent=11 // pred_check
          %p481 = pneg %p304
        $region54: #{tpu_custom_call.1} parent=11 // pred_check_branch
          %483 = sbr.rel (%p481) target = $region56
        $region55: #{tpu_custom_call.1} parent=11 // pred_region
          %s485 = ssub.s32 16, 16
          %486 = vsyncadd [#allocation11], %s485
          %s488 = sshll.u32 [#allocation10], 4
          %s489 = int_to_ptr.vmem [resolvable:$true] %s488
          %491 = dma.hbm_to_vmem [thread:$0]  %s11, 16, %s489, [#allocation11]
        $region56: #{tpu_custom_call.1} parent=11 // pred_fallthru
          _
        // Predicated region
        $region57: #{tpu_custom_call.1} parent=11 // pred_check
          %p492 = pneg %p325
        $region58: #{tpu_custom_call.1} parent=11 // pred_check_branch
          %494 = sbr.rel (%p492) target = $region60
        $region59: #{tpu_custom_call.1} parent=11 // pred_region
          _
        $region60: #{tpu_custom_call.1} parent=11 // pred_fallthru
          _
        // Predicated region
        $region61: #{tpu_custom_call.1} parent=11 // pred_check
          %p495 = pneg %p346
        $region62: #{tpu_custom_call.1} parent=11 // pred_check_branch
          %497 = sbr.rel (%p495) target = $region64
        $region63: #{tpu_custom_call.1} parent=11 // pred_region
          _
        $region64: #{tpu_custom_call.1} parent=11 // pred_fallthru
          _
        // Predicated region
        $region65: #{tpu_custom_call.1} parent=11 // pred_check
          %p498 = pneg %p367
        $region66: #{tpu_custom_call.1} parent=11 // pred_check_branch
          %500 = sbr.rel (%p498) target = $region68
        $region67: #{tpu_custom_call.1} parent=11 // pred_region
          _
        $region68: #{tpu_custom_call.1} parent=11 // pred_fallthru
          _
        // Predicated region
        $region69: #{tpu_custom_call.1} parent=11 // pred_check
          %p501 = pneg %p388
        $region70: #{tpu_custom_call.1} parent=11 // pred_check_branch
          %503 = sbr.rel (%p501) target = $region72
        $region71: #{tpu_custom_call.1} parent=11 // pred_region
          _
        $region72: #{tpu_custom_call.1} parent=11 // pred_fallthru
          _
      $region12: #{tpu_custom_call.1} parent=5 // pred_fallthru
        _
      %p504 = scmp.lt.s32.totalorder %s30, 2
      // Predicated region
      $region73: #{tpu_custom_call.1} parent=5 // pred_check
        %p505 = pneg %p504
      $region74: #{tpu_custom_call.1} parent=5 // pred_check_branch
        %507 = sbr.rel (%p505) target = $region76
      $region75: #{tpu_custom_call.1} parent=5 // pred_region
        // Predicated region
        $region77: #{tpu_custom_call.1} parent=75 // pred_check
          %p508 = pneg %p88
        $region78: #{tpu_custom_call.1} parent=75 // pred_check_branch
          %510 = sbr.rel (%p508) target = $region80
        $region79: #{tpu_custom_call.1} parent=75 // pred_region
          %s511 = sand.u32 %s30, 1
          %s512 = scalar_lea.sflag [#allocation8], %s511
          %s513 = sand.u32 %s78, 1
          %s514 = scalar_lea.vmem [#allocation7], %s513
          %s516 = ssub.s32 16, 16
          %517 = vsyncadd %s512, %s516
          %s518 = smul.addr %s37, 16
          %s519 = scalar_lea.hbm %s1, %s518
          %s521 = sshll.u32 %s514, 4
          %s522 = int_to_ptr.vmem [resolvable:$true] %s521
          %524 = dma.hbm_to_vmem [thread:$0]  %s519, 16, %s522, %s512
        $region80: #{tpu_custom_call.1} parent=75 // pred_fallthru
          _
      $region76: #{tpu_custom_call.1} parent=5 // pred_fallthru
        _
      %p525 = scmp.le.s32.totalorder 1, %s30
      %p526 = scmp.lt.s32.totalorder %s30, 3
      %p527 = pnand %p525, %p526
      %p528 = pneg %p527
      // Predicated region
      $region81: #{tpu_custom_call.1} parent=5 // pred_check
        _
      $region82: #{tpu_custom_call.1} parent=5 // pred_check_branch
        %530 = sbr.rel (%p527) target = $region84
      $region83: #{tpu_custom_call.1} parent=5 // pred_region
        %s531 = ssub.s32 %s30, 1
        // Predicated region
        $region85: #{tpu_custom_call.1} parent=83 // pred_check
          %p532 = pneg %p68
        $region86: #{tpu_custom_call.1} parent=83 // pred_check_branch
          %534 = sbr.rel (%p532) target = $region88
        $region87: #{tpu_custom_call.1} parent=83 // pred_region
          %535 = dma.done [#allocation5], 64
        $region88: #{tpu_custom_call.1} parent=83 // pred_fallthru
          _
        %s536 = sand.u32 %s35, 1
        %s537 = scalar_lea.sflag [#allocation8], %s536
        %s538 = sand.u32 %s81, 1
        %s539 = scalar_lea.vmem [#allocation7], %s538
        // Predicated region
        $region89: #{tpu_custom_call.1} parent=83 // pred_check
          %p540 = pneg %p94
        $region90: #{tpu_custom_call.1} parent=83 // pred_check_branch
          %542 = sbr.rel (%p540) target = $region92
        $region91: #{tpu_custom_call.1} parent=83 // pred_region
          %543 = dma.done %s537, 16
        $region92: #{tpu_custom_call.1} parent=83 // pred_fallthru
          _
        // Predicated region
        $region93: #{tpu_custom_call.1} parent=83 // pred_check
          %p544 = pneg %p283
        $region94: #{tpu_custom_call.1} parent=83 // pred_check_branch
          %546 = sbr.rel (%p544) target = $region96
        $region95: #{tpu_custom_call.1} parent=83 // pred_region
          %547 = dma.done [#allocation8], 256
        $region96: #{tpu_custom_call.1} parent=83 // pred_fallthru
          _
        // Predicated region
        $region97: #{tpu_custom_call.1} parent=83 // pred_check
          %p548 = pneg %p304
        $region98: #{tpu_custom_call.1} parent=83 // pred_check_branch
          %550 = sbr.rel (%p548) target = $region100
        $region99: #{tpu_custom_call.1} parent=83 // pred_region
          %551 = dma.done [#allocation11], 16
        $region100: #{tpu_custom_call.1} parent=83 // pred_fallthru
          _
        %p552 = pneg %p68
        %p553 = pneg %p65
        %s554 = sand.u32 %s35, 1
        %s555 = scalar_lea.sflag [#allocation8], %s554
        %s556 = sand.u32 %s81, 1
        %s557 = scalar_lea.vmem [#allocation7], %s556
        %p558 = pneg %p94
        %p559 = pneg %p91
        %p560 = pneg %p115
        %p561 = pneg %p112
        %p562 = pneg %p136
        %p563 = pneg %p133
        %p564 = pneg %p157
        %p565 = pneg %p154
        %p566 = pneg %p178
        %p567 = pneg %p175
        %p568 = pneg %p199
        %p569 = pneg %p196
        %p570 = pneg %p220
        %p571 = pneg %p217
        %p572 = pneg %p241
        %p573 = pneg %p238
        %p574 = pneg %p262
        %p575 = pneg %p259
        %p576 = pneg %p283
        %p577 = pneg %p280
        %p578 = pneg %p304
        %p579 = pneg %p301
        %p580 = pneg %p325
        %p581 = pneg %p322
        %p582 = pneg %p346
        %p583 = pneg %p343
        %p584 = pneg %p367
        %p585 = pneg %p364
        %p586 = pneg %p388
        %p587 = pneg %p385
        %p588 = pneg %p416
        %p589 = pneg %p413
        %s590 = sand.u32 %s403, 1
        %s591 = scalar_lea.sflag [#allocation6], %s590
        %s592 = sand.u32 %s403, 1
        %s593 = smul.addr %s592, 4
        %s594 = scalar_lea.vmem [#allocation12], %s593
        %p596 = scmp.eq.s32.totalorder %s40, 0
        // Predicated region
        $region101: #{tpu_custom_call.1} parent=83 // pred_check
          %p597 = pneg %p596
        $region102: #{tpu_custom_call.1} parent=83 // pred_check_branch
          %599 = sbr.rel (%p597) target = $region104
        $region103: #{tpu_custom_call.1} parent=83 // pred_region
          %v600 = vld [vmem:[#allocation4] sm:$0xf]
          %v601 = vld [vmem:[%s4] sm:$0xf]
          %v602 = vld [vmem:[%s4 + $0x4] sm:$0xf]
          %v603 = vld [vmem:[%s4 + $0x8] sm:$0xf]
          %v604 = vld [vmem:[%s4 + $0xc] sm:$0xf]
          %v605 = vld [vmem:[%s5] sm:$0x1]
          %v607 = vlaneseq
          %v608 = vshrl.u32 %v607, 7
          %v609 = vsub.s32 0, %v608
          %v610 = vrot.slane %v605, %v609
          %v616 = vunpack.c.l.b16 %v601
          %v617 = vunpack.c.l.b16 %v602
          %v618 = vunpack.c.l.b16 %v603
          %v619 = vunpack.c.l.b16 %v604
          %v620 = vpack.c.b16 %v617, %v616
          %v621 = vpack.c.b16 %v619, %v618
          %vm624 = vcmask 261120
          %v626 = vsel %vm624, %v600, 0
          %628 = vmatprep.subr.bf16.mxu0 0
          %629 = vmatpush1.bf16.msra.mxu0 0
          %630 = vmatprep.subr.bf16.mxu0 0
          %631 = vmatpush1.bf16.msra.mxu0 0
          %632 = vmatprep.subr.bf16.mxu0 0
          %633 = vmatpush1.bf16.msra.mxu0 0
          %634 = vmatprep.subr.bf16.mxu0 0
          %635 = vmatpush1.bf16.msra.mxu0 0
          %636 = vmatprep.subr.bf16.mxu0 0
          %637 = vmatpush1.bf16.msra.mxu0 0
          %638 = vmatprep.subr.bf16.mxu0 0
          %639 = vmatpush1.bf16.msra.mxu0 0
          %640 = vmatprep.subr.bf16.mxu0 0
          %641 = vmatpush1.bf16.msra.mxu0 %v621
          %642 = vmatprep.subr.bf16.mxu0 0
          %643 = vmatpush1.bf16.msra.mxu0 %v620
          %644 = vmatprep.subr.bf16.mxu0 0
          %645 = vmatpush2.bf16.msra.mxu0 0
          %646 = vmatprep.subr.bf16.mxu0 0
          %647 = vmatpush2.bf16.msra.mxu0 0
          %648 = vmatprep.subr.bf16.mxu0 0
          %649 = vmatpush2.bf16.msra.mxu0 0
          %650 = vmatprep.subr.bf16.mxu0 0
          %651 = vmatpush2.bf16.msra.mxu0 0
          %652 = vmatprep.subr.bf16.mxu0 0
          %653 = vmatpush2.bf16.msra.mxu0 0
          %654 = vmatprep.subr.bf16.mxu0 0
          %655 = vmatpush2.bf16.msra.mxu0 0
          %656 = vmatprep.subr.bf16.mxu0 0
          %657 = vmatpush2.bf16.msra.mxu0 0
          %658 = vmatprep.subr.bf16.mxu0 0
          %659 = vmatpush2.bf16.msra.mxu0 0
          %660 = vmatprep.mubr.bf16.mxu0 0
          %661 = vmatmul.mubr.bf16.gmra.mxu0 %v626
          %v662 = vpop.f32.mrf.mxu0
          %v663 = vadd.f32 %v610, %v662
          %v664 = vpop.f32.mrf.mxu0
          %v665 = vpop.f32.mrf.mxu0
          %v666 = vpop.f32.mrf.mxu0
          %667 = vdwg.mxu0
          %669 = vrot.lane.b32.xlu0 %v663, 120
          %v670 = vpop.permute.xlu0 %669
          %672 = vrot.lane.b32.xlu0 %v663, 112
          %v673 = vpop.permute.xlu0 %672
          %675 = vrot.lane.b32.xlu0 %v663, 104
          %v676 = vpop.permute.xlu0 %675
          %v678 = vcombine.low %v663, %v673
          %v679 = vcombine.high %v663, %v673
          %v681 = vunpack.c.l.s4 1983009808
          %v682 = vunpack.c.0.s8 %v681
          %v683 = vlaneseq
          %v684 = vshrl.u32 %v683, 7
          %v685 = vsub.s32 %v682, %v684
          %v686 = vrot.slane %v678, %v685
          %v688 = vunpack.c.l.s4 1983009808
          %v689 = vunpack.c.0.s8 %v688
          %v690 = vlaneseq
          %v691 = vshrl.u32 %v690, 7
          %v692 = vsub.s32 %v689, %v691
          %v693 = vrot.slane %v679, %v692
          %v694 = vcombine.low %v670, %v676
          %v695 = vcombine.high %v670, %v676
          %v697 = vunpack.c.l.s4 1983009808
          %v698 = vunpack.c.0.s8 %v697
          %v699 = vlaneseq
          %v700 = vshrl.u32 %v699, 7
          %v701 = vsub.s32 %v698, %v700
          %v702 = vrot.slane %v694, %v701
          %v704 = vunpack.c.l.s4 1983009808
          %v705 = vunpack.c.0.s8 %v704
          %v706 = vlaneseq
          %v707 = vshrl.u32 %v706, 7
          %v708 = vsub.s32 %v705, %v707
          %v709 = vrot.slane %v695, %v708
          %v710 = vcombine.low %v686, %v702
          %v711 = vcombine.high %v686, %v702
          %v713 = vunpack.c.l.s4 1934713408
          %v714 = vunpack.c.0.s8 %v713
          %v715 = vlaneseq
          %v716 = vshrl.u32 %v715, 7
          %v717 = vsub.s32 %v714, %v716
          %v718 = vrot.slane %v710, %v717
          %v720 = vunpack.c.l.s4 1934713408
          %v721 = vunpack.c.0.s8 %v720
          %v722 = vlaneseq
          %v723 = vshrl.u32 %v722, 7
          %v724 = vsub.s32 %v721, %v723
          %v725 = vrot.slane %v711, %v724
          %v726 = vcombine.low %v693, %v709
          %v727 = vcombine.high %v693, %v709
          %v729 = vunpack.c.l.s4 1934713408
          %v730 = vunpack.c.0.s8 %v729
          %v731 = vlaneseq
          %v732 = vshrl.u32 %v731, 7
          %v733 = vsub.s32 %v730, %v732
          %v734 = vrot.slane %v726, %v733
          %v736 = vunpack.c.l.s4 1934713408
          %v737 = vunpack.c.0.s8 %v736
          %v738 = vlaneseq
          %v739 = vshrl.u32 %v738, 7
          %v740 = vsub.s32 %v737, %v739
          %v741 = vrot.slane %v727, %v740
          %v742 = vcombine.high %v718, 0.0
          %v743 = vcombine.high %v725, 0.0
          %v744 = vcombine.high %v734, 0.0
          %v745 = vcombine.high %v741, 0.0
          %v746 = vcombine.low %v718, %v725
          %v748 = vunpack.c.l.s4 1983009808
          %v749 = vunpack.c.0.s8 %v748
          %v750 = vlaneseq
          %v751 = vshrl.u32 %v750, 7
          %v752 = vsub.s32 %v749, %v751
          %v753 = vrot.slane %v746, %v752
          %v754 = vcombine.low %v742, %v743
          %v756 = vunpack.c.l.s4 1983009808
          %v757 = vunpack.c.0.s8 %v756
          %v758 = vlaneseq
          %v759 = vshrl.u32 %v758, 7
          %v760 = vsub.s32 %v757, %v759
          %v761 = vrot.slane %v754, %v760
          %v762 = vcombine.low %v734, %v741
          %v764 = vunpack.c.l.s4 1983009808
          %v765 = vunpack.c.0.s8 %v764
          %v766 = vlaneseq
          %v767 = vshrl.u32 %v766, 7
          %v768 = vsub.s32 %v765, %v767
          %v769 = vrot.slane %v762, %v768
          %v770 = vcombine.low %v744, %v745
          %v772 = vunpack.c.l.s4 1983009808
          %v773 = vunpack.c.0.s8 %v772
          %v774 = vlaneseq
          %v775 = vshrl.u32 %v774, 7
          %v776 = vsub.s32 %v773, %v775
          %v777 = vrot.slane %v770, %v776
          %v778 = vcombine.low %v753, %v761
          %v779 = vcombine.high %v753, %v761
          %v781 = vunpack.c.l.s4 1934713408
          %v782 = vunpack.c.0.s8 %v781
          %v783 = vlaneseq
          %v784 = vshrl.u32 %v783, 7
          %v785 = vsub.s32 %v782, %v784
          %v786 = vrot.slane %v778, %v785
          %v788 = vunpack.c.l.s4 1934713408
          %v789 = vunpack.c.0.s8 %v788
          %v790 = vlaneseq
          %v791 = vshrl.u32 %v790, 7
          %v792 = vsub.s32 %v789, %v791
          %v793 = vrot.slane %v779, %v792
          %v794 = vcombine.low %v769, %v777
          %v795 = vcombine.high %v769, %v777
          %v797 = vunpack.c.l.s4 1934713408
          %v798 = vunpack.c.0.s8 %v797
          %v799 = vlaneseq
          %v800 = vshrl.u32 %v799, 7
          %v801 = vsub.s32 %v798, %v800
          %v802 = vrot.slane %v794, %v801
          %v804 = vunpack.c.l.s4 1934713408
          %v805 = vunpack.c.0.s8 %v804
          %v806 = vlaneseq
          %v807 = vshrl.u32 %v806, 7
          %v808 = vsub.s32 %v805, %v807
          %v809 = vrot.slane %v795, %v808
          %v810 = vcombine.low %v786, %v802
          %v811 = vcombine.high %v786, %v802
          %v812 = vcombine.low %v793, %v809
          %v813 = vcombine.high %v793, %v809
          %v814 = vpack.c.bf16 %v810, %v810
          %v815 = vpack.c.bf16 %v811, %v811
          %v816 = vpack.c.bf16 %v812, %v812
          %v817 = vpack.c.bf16 %v813, %v813
          %vm818 = vcmask 60416
          %819 = vst.msk [vmem:[#allocation2] sm:$0xf] %vm818, %v814
          %820 = vst.msk [vmem:[#allocation2 + $0x4] sm:$0xf] %vm818, %v815
          %821 = vst.msk [vmem:[#allocation2 + $0x8] sm:$0xf] %vm818, %v816
          %822 = vst.msk [vmem:[#allocation2 + $0xc] sm:$0xf] %vm818, %v817
          %823 = vrot.lane.b32.xlu0 %v663, 96
          %v824 = vpop.permute.xlu0 %823
          %825 = vrot.lane.b32.xlu0 %v670, 96
          %v826 = vpop.permute.xlu0 %825
          %827 = vrot.lane.b32.xlu0 %v673, 96
          %v828 = vpop.permute.xlu0 %827
          %829 = vrot.lane.b32.xlu0 %v676, 96
          %v830 = vpop.permute.xlu0 %829
          %v835 = vcombine.low %v824, %v828
          %v836 = vcombine.high %v824, %v828
          %v838 = vunpack.c.l.s4 1983009808
          %v839 = vunpack.c.0.s8 %v838
          %v840 = vlaneseq
          %v841 = vshrl.u32 %v840, 7
          %v842 = vsub.s32 %v839, %v841
          %v843 = vrot.slane %v835, %v842
          %v845 = vunpack.c.l.s4 1983009808
          %v846 = vunpack.c.0.s8 %v845
          %v847 = vlaneseq
          %v848 = vshrl.u32 %v847, 7
          %v849 = vsub.s32 %v846, %v848
          %v850 = vrot.slane %v836, %v849
          %v851 = vcombine.low %v826, %v830
          %v852 = vcombine.high %v826, %v830
          %v854 = vunpack.c.l.s4 1983009808
          %v855 = vunpack.c.0.s8 %v854
          %v856 = vlaneseq
          %v857 = vshrl.u32 %v856, 7
          %v858 = vsub.s32 %v855, %v857
          %v859 = vrot.slane %v851, %v858
          %v861 = vunpack.c.l.s4 1983009808
          %v862 = vunpack.c.0.s8 %v861
          %v863 = vlaneseq
          %v864 = vshrl.u32 %v863, 7
          %v865 = vsub.s32 %v862, %v864
          %v866 = vrot.slane %v852, %v865
          %v867 = vcombine.low %v843, %v859
          %v868 = vcombine.high %v843, %v859
          %v870 = vunpack.c.l.s4 1934713408
          %v871 = vunpack.c.0.s8 %v870
          %v872 = vlaneseq
          %v873 = vshrl.u32 %v872, 7
          %v874 = vsub.s32 %v871, %v873
          %v875 = vrot.slane %v867, %v874
          %v877 = vunpack.c.l.s4 1934713408
          %v878 = vunpack.c.0.s8 %v877
          %v879 = vlaneseq
          %v880 = vshrl.u32 %v879, 7
          %v881 = vsub.s32 %v878, %v880
          %v882 = vrot.slane %v868, %v881
          %v883 = vcombine.low %v850, %v866
          %v884 = vcombine.high %v850, %v866
          %v886 = vunpack.c.l.s4 1934713408
          %v887 = vunpack.c.0.s8 %v886
          %v888 = vlaneseq
          %v889 = vshrl.u32 %v888, 7
          %v890 = vsub.s32 %v887, %v889
          %v891 = vrot.slane %v883, %v890
          %v893 = vunpack.c.l.s4 1934713408
          %v894 = vunpack.c.0.s8 %v893
          %v895 = vlaneseq
          %v896 = vshrl.u32 %v895, 7
          %v897 = vsub.s32 %v894, %v896
          %v898 = vrot.slane %v884, %v897
          %v899 = vcombine.high %v875, 0.0
          %v900 = vcombine.high %v882, 0.0
          %v901 = vcombine.high %v891, 0.0
          %v902 = vcombine.high %v898, 0.0
          %v903 = vcombine.low %v875, %v882
          %v905 = vunpack.c.l.s4 1983009808
          %v906 = vunpack.c.0.s8 %v905
          %v907 = vlaneseq
          %v908 = vshrl.u32 %v907, 7
          %v909 = vsub.s32 %v906, %v908
          %v910 = vrot.slane %v903, %v909
          %v911 = vcombine.low %v899, %v900
          %v913 = vunpack.c.l.s4 1983009808
          %v914 = vunpack.c.0.s8 %v913
          %v915 = vlaneseq
          %v916 = vshrl.u32 %v915, 7
          %v917 = vsub.s32 %v914, %v916
          %v918 = vrot.slane %v911, %v917
          %v919 = vcombine.low %v891, %v898
          %v921 = vunpack.c.l.s4 1983009808
          %v922 = vunpack.c.0.s8 %v921
          %v923 = vlaneseq
          %v924 = vshrl.u32 %v923, 7
          %v925 = vsub.s32 %v922, %v924
          %v926 = vrot.slane %v919, %v925
          %v927 = vcombine.low %v901, %v902
          %v929 = vunpack.c.l.s4 1983009808
          %v930 = vunpack.c.0.s8 %v929
          %v931 = vlaneseq
          %v932 = vshrl.u32 %v931, 7
          %v933 = vsub.s32 %v930, %v932
          %v934 = vrot.slane %v927, %v933
          %v935 = vcombine.low %v910, %v918
          %v936 = vcombine.high %v910, %v918
          %v938 = vunpack.c.l.s4 1934713408
          %v939 = vunpack.c.0.s8 %v938
          %v940 = vlaneseq
          %v941 = vshrl.u32 %v940, 7
          %v942 = vsub.s32 %v939, %v941
          %v943 = vrot.slane %v935, %v942
          %v945 = vunpack.c.l.s4 1934713408
          %v946 = vunpack.c.0.s8 %v945
          %v947 = vlaneseq
          %v948 = vshrl.u32 %v947, 7
          %v949 = vsub.s32 %v946, %v948
          %v950 = vrot.slane %v936, %v949
          %v951 = vcombine.low %v926, %v934
          %v952 = vcombine.high %v926, %v934
          %v954 = vunpack.c.l.s4 1934713408
          %v955 = vunpack.c.0.s8 %v954
          %v956 = vlaneseq
          %v957 = vshrl.u32 %v956, 7
          %v958 = vsub.s32 %v955, %v957
          %v959 = vrot.slane %v951, %v958
          %v961 = vunpack.c.l.s4 1934713408
          %v962 = vunpack.c.0.s8 %v961
          %v963 = vlaneseq
          %v964 = vshrl.u32 %v963, 7
          %v965 = vsub.s32 %v962, %v964
          %v966 = vrot.slane %v952, %v965
          %v967 = vcombine.low %v943, %v959
          %v968 = vcombine.high %v943, %v959
          %v969 = vcombine.low %v950, %v966
          %v970 = vcombine.high %v950, %v966
          %v971 = vpack.c.bf16 %v967, %v967
          %v972 = vpack.c.bf16 %v968, %v968
          %v973 = vpack.c.bf16 %v969, %v969
          %v974 = vpack.c.bf16 %v970, %v970
          %975 = vst.msk [vmem:[#allocation3] sm:$0xf] %vm818, %v971
          %976 = vst.msk [vmem:[#allocation3 + $0x4] sm:$0xf] %vm818, %v972
          %977 = vst.msk [vmem:[#allocation3 + $0x8] sm:$0xf] %vm818, %v973
          %978 = vst.msk [vmem:[#allocation3 + $0xc] sm:$0xf] %vm818, %v974
        $region104: #{tpu_custom_call.1} parent=83 // pred_fallthru
          _
        %s979 = smul.u32 %s40, 8
        %s980 = sshra.s32 %s979, 3
        %s981 = sand.u32 %s979, 7
        %s982 = smul.addr %s980, 4
        %s983 = scalar_lea.vmem [#allocation4], %s982
        %v984 = vld [vmem:[%s983] sm:$0xf]
        %v985 = vld [vmem:[%s539] sm:$0x1]
        %v986 = vld [vmem:[%s2] sm:$0xf]
        %v987 = vld [vmem:[%s2 + $0x4] sm:$0xf]
        %v988 = vld [vmem:[%s2 + $0x8] sm:$0xf]
        %v989 = vld [vmem:[%s2 + $0xc] sm:$0xf]
        %v990 = vld [vmem:[%s3] sm:$0x1]
        %v992 = vlaneseq
        %v993 = vshrl.u32 %v992, 7
        %v994 = vsub.s32 0, %v993
        %v995 = vrot.slane %v990, %v994
        %v1001 = vunpack.c.l.b16 %v986
        %v1002 = vunpack.c.l.b16 %v987
        %v1003 = vunpack.c.l.b16 %v988
        %v1004 = vunpack.c.l.b16 %v989
        %v1005 = vpack.c.b16 %v1002, %v1001
        %v1006 = vpack.c.b16 %v1004, %v1003
        %vm1009 = vcmask 261120
        %v1011 = vsel %vm1009, %v984, 0
        %1013 = vmatprep.subr.bf16.mxu0 0
        %1014 = vmatpush1.bf16.msra.mxu0 0
        %1015 = vmatprep.subr.bf16.mxu0 0
        %1016 = vmatpush1.bf16.msra.mxu0 0
        %1017 = vmatprep.subr.bf16.mxu0 0
        %1018 = vmatpush1.bf16.msra.mxu0 0
        %1019 = vmatprep.subr.bf16.mxu0 0
        %1020 = vmatpush1.bf16.msra.mxu0 0
        %1021 = vmatprep.subr.bf16.mxu0 0
        %1022 = vmatpush1.bf16.msra.mxu0 0
        %1023 = vmatprep.subr.bf16.mxu0 0
        %1024 = vmatpush1.bf16.msra.mxu0 0
        %1025 = vmatprep.subr.bf16.mxu0 0
        %1026 = vmatpush1.bf16.msra.mxu0 %v1006
        %1027 = vmatprep.subr.bf16.mxu0 0
        %1028 = vmatpush1.bf16.msra.mxu0 %v1005
        %1029 = vmatprep.subr.bf16.mxu0 0
        %1030 = vmatpush2.bf16.msra.mxu0 0
        %1031 = vmatprep.subr.bf16.mxu0 0
        %1032 = vmatpush2.bf16.msra.mxu0 0
        %1033 = vmatprep.subr.bf16.mxu0 0
        %1034 = vmatpush2.bf16.msra.mxu0 0
        %1035 = vmatprep.subr.bf16.mxu0 0
        %1036 = vmatpush2.bf16.msra.mxu0 0
        %1037 = vmatprep.subr.bf16.mxu0 0
        %1038 = vmatpush2.bf16.msra.mxu0 0
        %1039 = vmatprep.subr.bf16.mxu0 0
        %1040 = vmatpush2.bf16.msra.mxu0 0
        %1041 = vmatprep.subr.bf16.mxu0 0
        %1042 = vmatpush2.bf16.msra.mxu0 0
        %1043 = vmatprep.subr.bf16.mxu0 0
        %1044 = vmatpush2.bf16.msra.mxu0 0
        %1045 = vmatprep.mubr.bf16.mxu0 0
        %1046 = vmatmul.mubr.bf16.gmra.mxu0 %v1011
        %v1047 = vpop.f32.mrf.mxu0
        %v1048 = vadd.f32 %v995, %v1047
        %v1049 = vpop.f32.mrf.mxu0
        %v1050 = vpop.f32.mrf.mxu0
        %v1051 = vpop.f32.mrf.mxu0
        %1052 = vdwg.mxu0
        %v1053 = vmul.f32 %v1048, 0.35355338
        %v1054 = vpack.c.bf16 %v1053, %v1053
        %1056 = vrot.lane.b32.xlu0 %v1054, 120
        %v1057 = vpop.permute.xlu0 %1056
        %1058 = vrot.lane.b32.xlu0 %v1054, 112
        %v1059 = vpop.permute.xlu0 %1058
        %1060 = vrot.lane.b32.xlu0 %v1054, 104
        %v1061 = vpop.permute.xlu0 %1060
        %v1063 = vunpack.c.l.s4 1983009808
        %v1064 = vunpack.c.0.s8 %v1063
        %v1065 = vlaneseq
        %v1066 = vshrl.u32 %v1065, 7
        %v1067 = vsub.s32 %v1064, %v1066
        %v1068 = vrot.slane %v1054, %v1067
        %v1071 = vunpack.c.l.s4 1983009808
        %v1072 = vunpack.c.0.s8 %v1071
        %v1073 = vlaneseq
        %v1074 = vshrl.u32 %v1073, 7
        %v1075 = vsub.s32 %v1072, %v1074
        %v1076 = vrot.slane %v1059, %v1075
        %v1077 = vcombine.low %v1068, %v1076
        %v1078 = vcombine.high %v1068, %v1076
        %v1080 = vunpack.c.l.s4 1934713408
        %v1081 = vunpack.c.0.s8 %v1080
        %v1082 = vlaneseq
        %v1083 = vshrl.u32 %v1082, 7
        %v1084 = vsub.s32 %v1081, %v1083
        %v1085 = vrot.slane %v1077, %v1084
        %v1087 = vunpack.c.l.s4 1934713408
        %v1088 = vunpack.c.0.s8 %v1087
        %v1089 = vlaneseq
        %v1090 = vshrl.u32 %v1089, 7
        %v1091 = vsub.s32 %v1088, %v1090
        %v1092 = vrot.slane %v1078, %v1091
        %v1093 = vcombine.high %v1085, 0
        %v1094 = vcombine.high %v1092, 0
        %v1097 = vunpack.c.l.s4 1983009808
        %v1098 = vunpack.c.0.s8 %v1097
        %v1099 = vlaneseq
        %v1100 = vshrl.u32 %v1099, 7
        %v1101 = vsub.s32 %v1098, %v1100
        %v1102 = vrot.slane %v1057, %v1101
        %v1105 = vunpack.c.l.s4 1983009808
        %v1106 = vunpack.c.0.s8 %v1105
        %v1107 = vlaneseq
        %v1108 = vshrl.u32 %v1107, 7
        %v1109 = vsub.s32 %v1106, %v1108
        %v1110 = vrot.slane %v1061, %v1109
        %v1111 = vcombine.low %v1102, %v1110
        %v1112 = vcombine.high %v1102, %v1110
        %v1114 = vunpack.c.l.s4 1934713408
        %v1115 = vunpack.c.0.s8 %v1114
        %v1116 = vlaneseq
        %v1117 = vshrl.u32 %v1116, 7
        %v1118 = vsub.s32 %v1115, %v1117
        %v1119 = vrot.slane %v1111, %v1118
        %v1121 = vunpack.c.l.s4 1934713408
        %v1122 = vunpack.c.0.s8 %v1121
        %v1123 = vlaneseq
        %v1124 = vshrl.u32 %v1123, 7
        %v1125 = vsub.s32 %v1122, %v1124
        %v1126 = vrot.slane %v1112, %v1125
        %v1127 = vcombine.high %v1119, 0
        %v1128 = vcombine.high %v1126, 0
        %v1131 = vpack.i.b16 %v1119, %v1085
        %v1133 = vshrl.u32 %v1085, 16
        %v1134 = vshrl.u32 %v1119, 16
        %v1135 = vpack.i.b16 %v1134, %v1133
        %v1139 = vpack.i.b16 %v1127, %v1093
        %v1141 = vshrl.u32 %v1093, 16
        %v1142 = vshrl.u32 %v1127, 16
        %v1143 = vpack.i.b16 %v1142, %v1141
        %v1147 = vpack.i.b16 %v1126, %v1092
        %v1149 = vshrl.u32 %v1092, 16
        %v1150 = vshrl.u32 %v1126, 16
        %v1151 = vpack.i.b16 %v1150, %v1149
        %v1155 = vpack.i.b16 %v1128, %v1094
        %v1157 = vshrl.u32 %v1094, 16
        %v1158 = vshrl.u32 %v1128, 16
        %v1159 = vpack.i.b16 %v1158, %v1157
        %v1161 = vcombine.low %v1131, %v1147
        %v1163 = vunpack.c.l.s4 1983009808
        %v1164 = vunpack.c.0.s8 %v1163
        %v1165 = vlaneseq
        %v1166 = vshrl.u32 %v1165, 7
        %v1167 = vsub.s32 %v1164, %v1166
        %v1168 = vrot.slane %v1161, %v1167
        %v1169 = vcombine.low %v1139, %v1155
        %v1171 = vunpack.c.l.s4 1983009808
        %v1172 = vunpack.c.0.s8 %v1171
        %v1173 = vlaneseq
        %v1174 = vshrl.u32 %v1173, 7
        %v1175 = vsub.s32 %v1172, %v1174
        %v1176 = vrot.slane %v1169, %v1175
        %v1177 = vcombine.low %v1168, %v1176
        %v1179 = vunpack.c.l.s4 1934713408
        %v1180 = vunpack.c.0.s8 %v1179
        %v1181 = vlaneseq
        %v1182 = vshrl.u32 %v1181, 7
        %v1183 = vsub.s32 %v1180, %v1182
        %v1184 = vrot.slane %v1177, %v1183
        %v1185 = vcombine.high %v1184, 0
        %v1186 = vcombine.low %v1135, %v1151
        %v1188 = vunpack.c.l.s4 1983009808
        %v1189 = vunpack.c.0.s8 %v1188
        %v1190 = vlaneseq
        %v1191 = vshrl.u32 %v1190, 7
        %v1192 = vsub.s32 %v1189, %v1191
        %v1193 = vrot.slane %v1186, %v1192
        %v1194 = vcombine.low %v1143, %v1159
        %v1196 = vunpack.c.l.s4 1983009808
        %v1197 = vunpack.c.0.s8 %v1196
        %v1198 = vlaneseq
        %v1199 = vshrl.u32 %v1198, 7
        %v1200 = vsub.s32 %v1197, %v1199
        %v1201 = vrot.slane %v1194, %v1200
        %v1202 = vcombine.low %v1193, %v1201
        %v1204 = vunpack.c.l.s4 1934713408
        %v1205 = vunpack.c.0.s8 %v1204
        %v1206 = vlaneseq
        %v1207 = vshrl.u32 %v1206, 7
        %v1208 = vsub.s32 %v1205, %v1207
        %v1209 = vrot.slane %v1202, %v1208
        %v1210 = vcombine.high %v1209, 0
        %v1213 = vpack.i.b16 %v1209, %v1184
        %v1214 = vshrl.u32 %v1184, 16
        %v1215 = vshrl.u32 %v1209, 16
        %v1216 = vpack.i.b16 %v1215, %v1214
        %v1219 = vpack.i.b16 %v1210, %v1185
        %v1220 = vshrl.u32 %v1185, 16
        %v1221 = vshrl.u32 %v1210, 16
        %v1222 = vpack.i.b16 %v1221, %v1220
        %v1223 = vld [vmem:[#allocation2] sm:$0xf]
        %v1224 = vld [vmem:[#allocation2 + $0x4] sm:$0xf]
        %v1225 = vld [vmem:[#allocation2 + $0x8] sm:$0xf]
        %v1226 = vld [vmem:[#allocation2 + $0xc] sm:$0xf]
        %v1227 = vld [vmem:[#allocation3] sm:$0xf]
        %v1228 = vld [vmem:[#allocation3 + $0x4] sm:$0xf]
        %v1229 = vld [vmem:[#allocation3 + $0x8] sm:$0xf]
        %v1230 = vld [vmem:[#allocation3 + $0xc] sm:$0xf]
        %v1232 = vlaneseq
        %v1233 = vshrl.u32 %v1232, 7
        %v1234 = vsub.s32 0, %v1233
        %v1235 = vrot.slane %v985, %v1234
        %vm1237 = vcmask 64512
        %v1239 = vsel %vm1237, %v1213, 0
        %v1242 = vsel %vm1237, %v1223, 0
        %1244 = vmatprep.subr.bf16.mxu0 0
        %1245 = vmatpush1.bf16.xpose.msra.mxu0 0
        %1246 = vmatprep.subr.bf16.mxu0 0
        %1247 = vmatpush1.bf16.xpose.msra.mxu0 0
        %1248 = vmatprep.subr.bf16.mxu0 0
        %1249 = vmatpush1.bf16.xpose.msra.mxu0 0
        %1250 = vmatprep.subr.bf16.mxu0 0
        %1251 = vmatpush1.bf16.xpose.msra.mxu0 0
        %1252 = vmatprep.subr.bf16.mxu0 0
        %1253 = vmatpush1.bf16.xpose.msra.mxu0 0
        %1254 = vmatprep.subr.bf16.mxu0 0
        %1255 = vmatpush1.bf16.xpose.msra.mxu0 0
        %1256 = vmatprep.subr.bf16.mxu0 0
        %1257 = vmatpush1.bf16.xpose.msra.mxu0 0
        %1258 = vmatprep.subr.bf16.mxu0 0
        %1259 = vmatpush1.bf16.xpose.msra.mxu0 %v1242
        %1260 = vmatprep.subr.bf16.mxu0 0
        %1261 = vmatpush2.bf16.xpose.msra.mxu0 0
        %1262 = vmatprep.subr.bf16.mxu0 0
        %1263 = vmatpush2.bf16.xpose.msra.mxu0 0
        %1264 = vmatprep.subr.bf16.mxu0 0
        %1265 = vmatpush2.bf16.xpose.msra.mxu0 0
        %1266 = vmatprep.subr.bf16.mxu0 0
        %1267 = vmatpush2.bf16.xpose.msra.mxu0 0
        %1268 = vmatprep.subr.bf16.mxu0 0
        %1269 = vmatpush2.bf16.xpose.msra.mxu0 0
        %1270 = vmatprep.subr.bf16.mxu0 0
        %1271 = vmatpush2.bf16.xpose.msra.mxu0 0
        %1272 = vmatprep.subr.bf16.mxu0 0
        %1273 = vmatpush2.bf16.xpose.msra.mxu0 0
        %1274 = vmatprep.subr.bf16.mxu0 0
        %1275 = vmatpush2.bf16.xpose.msra.mxu0 0
        %1276 = vmatprep.mubr.bf16.mxu0 0
        %1277 = vmatmul.mubr.bf16.gmra.mxu0 %v1239
        %v1278 = vpop.f32.mrf.mxu0
        %v1279 = vadd.f32 %v1235, %v1278
        %v1280 = vpop.f32.mrf.mxu0
        %v1281 = vpop.f32.mrf.mxu0
        %v1282 = vpop.f32.mrf.mxu0
        %1283 = vdwg.mxu0
        %v1285 = vsel %vm1237, %v1216, 0
        %v1288 = vsel %vm1237, %v1224, 0
        %1290 = vmatprep.subr.bf16.mxu0 0
        %1291 = vmatpush1.bf16.xpose.msra.mxu0 0
        %1292 = vmatprep.subr.bf16.mxu0 0
        %1293 = vmatpush1.bf16.xpose.msra.mxu0 0
        %1294 = vmatprep.subr.bf16.mxu0 0
        %1295 = vmatpush1.bf16.xpose.msra.mxu0 0
        %1296 = vmatprep.subr.bf16.mxu0 0
        %1297 = vmatpush1.bf16.xpose.msra.mxu0 0
        %1298 = vmatprep.subr.bf16.mxu0 0
        %1299 = vmatpush1.bf16.xpose.msra.mxu0 0
        %1300 = vmatprep.subr.bf16.mxu0 0
        %1301 = vmatpush1.bf16.xpose.msra.mxu0 0
        %1302 = vmatprep.subr.bf16.mxu0 0
        %1303 = vmatpush1.bf16.xpose.msra.mxu0 0
        %1304 = vmatprep.subr.bf16.mxu0 0
        %1305 = vmatpush1.bf16.xpose.msra.mxu0 %v1288
        %1306 = vmatprep.subr.bf16.mxu0 0
        %1307 = vmatpush2.bf16.xpose.msra.mxu0 0
        %1308 = vmatprep.subr.bf16.mxu0 0
        %1309 = vmatpush2.bf16.xpose.msra.mxu0 0
        %1310 = vmatprep.subr.bf16.mxu0 0
        %1311 = vmatpush2.bf16.xpose.msra.mxu0 0
        %1312 = vmatprep.subr.bf16.mxu0 0
        %1313 = vmatpush2.bf16.xpose.msra.mxu0 0
        %1314 = vmatprep.subr.bf16.mxu0 0
        %1315 = vmatpush2.bf16.xpose.msra.mxu0 0
        %1316 = vmatprep.subr.bf16.mxu0 0
        %1317 = vmatpush2.bf16.xpose.msra.mxu0 0
        %1318 = vmatprep.subr.bf16.mxu0 0
        %1319 = vmatpush2.bf16.xpose.msra.mxu0 0
        %1320 = vmatprep.subr.bf16.mxu0 0
        %1321 = vmatpush2.bf16.xpose.msra.mxu0 0
        %1322 = vmatprep.mubr.bf16.mxu0 0
        %1323 = vmatmul.mubr.bf16.gmra.mxu0 %v1285
        %v1324 = vpop.f32.mrf.mxu0
        %v1325 = vadd.f32 %v1235, %v1324
        %v1326 = vpop.f32.mrf.mxu0
        %v1327 = vpop.f32.mrf.mxu0
        %v1328 = vpop.f32.mrf.mxu0
        %1329 = vdwg.mxu0
        %v1331 = vsel %vm1237, %v1219, 0
        %v1334 = vsel %vm1237, %v1225, 0
        %1336 = vmatprep.subr.bf16.mxu0 0
        %1337 = vmatpush1.bf16.xpose.msra.mxu0 0
        %1338 = vmatprep.subr.bf16.mxu0 0
        %1339 = vmatpush1.bf16.xpose.msra.mxu0 0
        %1340 = vmatprep.subr.bf16.mxu0 0
        %1341 = vmatpush1.bf16.xpose.msra.mxu0 0
        %1342 = vmatprep.subr.bf16.mxu0 0
        %1343 = vmatpush1.bf16.xpose.msra.mxu0 0
        %1344 = vmatprep.subr.bf16.mxu0 0
        %1345 = vmatpush1.bf16.xpose.msra.mxu0 0
        %1346 = vmatprep.subr.bf16.mxu0 0
        %1347 = vmatpush1.bf16.xpose.msra.mxu0 0
        %1348 = vmatprep.subr.bf16.mxu0 0
        %1349 = vmatpush1.bf16.xpose.msra.mxu0 0
        %1350 = vmatprep.subr.bf16.mxu0 0
        %1351 = vmatpush1.bf16.xpose.msra.mxu0 %v1334
        %1352 = vmatprep.subr.bf16.mxu0 0
        %1353 = vmatpush2.bf16.xpose.msra.mxu0 0
        %1354 = vmatprep.subr.bf16.mxu0 0
        %1355 = vmatpush2.bf16.xpose.msra.mxu0 0
        %1356 = vmatprep.subr.bf16.mxu0 0
        %1357 = vmatpush2.bf16.xpose.msra.mxu0 0
        %1358 = vmatprep.subr.bf16.mxu0 0
        %1359 = vmatpush2.bf16.xpose.msra.mxu0 0
        %1360 = vmatprep.subr.bf16.mxu0 0
        %1361 = vmatpush2.bf16.xpose.msra.mxu0 0
        %1362 = vmatprep.subr.bf16.mxu0 0
        %1363 = vmatpush2.bf16.xpose.msra.mxu0 0
        %1364 = vmatprep.subr.bf16.mxu0 0
        %1365 = vmatpush2.bf16.xpose.msra.mxu0 0
        %1366 = vmatprep.subr.bf16.mxu0 0
        %1367 = vmatpush2.bf16.xpose.msra.mxu0 0
        %1368 = vmatprep.mubr.bf16.mxu0 0
        %1369 = vmatmul.mubr.bf16.gmra.mxu0 %v1331
        %v1370 = vpop.f32.mrf.mxu0
        %v1371 = vadd.f32 %v1235, %v1370
        %v1372 = vpop.f32.mrf.mxu0
        %v1373 = vpop.f32.mrf.mxu0
        %v1374 = vpop.f32.mrf.mxu0
        %1375 = vdwg.mxu0
        %v1377 = vsel %vm1237, %v1222, 0
        %v1380 = vsel %vm1237, %v1226, 0
        %1382 = vmatprep.subr.bf16.mxu0 0
        %1383 = vmatpush1.bf16.xpose.msra.mxu0 0
        %1384 = vmatprep.subr.bf16.mxu0 0
        %1385 = vmatpush1.bf16.xpose.msra.mxu0 0
        %1386 = vmatprep.subr.bf16.mxu0 0
        %1387 = vmatpush1.bf16.xpose.msra.mxu0 0
        %1388 = vmatprep.subr.bf16.mxu0 0
        %1389 = vmatpush1.bf16.xpose.msra.mxu0 0
        %1390 = vmatprep.subr.bf16.mxu0 0
        %1391 = vmatpush1.bf16.xpose.msra.mxu0 0
        %1392 = vmatprep.subr.bf16.mxu0 0
        %1393 = vmatpush1.bf16.xpose.msra.mxu0 0
        %1394 = vmatprep.subr.bf16.mxu0 0
        %1395 = vmatpush1.bf16.xpose.msra.mxu0 0
        %1396 = vmatprep.subr.bf16.mxu0 0
        %1397 = vmatpush1.bf16.xpose.msra.mxu0 %v1380
        %1398 = vmatprep.subr.bf16.mxu0 0
        %1399 = vmatpush2.bf16.xpose.msra.mxu0 0
        %1400 = vmatprep.subr.bf16.mxu0 0
        %1401 = vmatpush2.bf16.xpose.msra.mxu0 0
        %1402 = vmatprep.subr.bf16.mxu0 0
        %1403 = vmatpush2.bf16.xpose.msra.mxu0 0
        %1404 = vmatprep.subr.bf16.mxu0 0
        %1405 = vmatpush2.bf16.xpose.msra.mxu0 0
        %1406 = vmatprep.subr.bf16.mxu0 0
        %1407 = vmatpush2.bf16.xpose.msra.mxu0 0
        %1408 = vmatprep.subr.bf16.mxu0 0
        %1409 = vmatpush2.bf16.xpose.msra.mxu0 0
        %1410 = vmatprep.subr.bf16.mxu0 0
        %1411 = vmatpush2.bf16.xpose.msra.mxu0 0
        %1412 = vmatprep.subr.bf16.mxu0 0
        %1413 = vmatpush2.bf16.xpose.msra.mxu0 0
        %1414 = vmatprep.mubr.bf16.mxu0 0
        %1415 = vmatmul.mubr.bf16.gmra.mxu0 %v1377
        %v1416 = vpop.f32.mrf.mxu0
        %v1417 = vadd.f32 %v1235, %v1416
        %v1418 = vpop.f32.mrf.mxu0
        %v1419 = vpop.f32.mrf.mxu0
        %v1420 = vpop.f32.mrf.mxu0
        %1421 = vdwg.mxu0
        %v1422 = vsel %vm1237, %v1279, -inf
        %1423 = vmax.xlane.f32.xlu0 %v1422
        %v1424 = vpop.xlane.xlu0 %1423
        %v1425 = vsel %vm1237, %v1325, -inf
        %1426 = vmax.xlane.f32.xlu0 %v1425
        %v1427 = vpop.xlane.xlu0 %1426
        %v1428 = vsel %vm1237, %v1371, -inf
        %1429 = vmax.xlane.f32.xlu0 %v1428
        %v1430 = vpop.xlane.xlu0 %1429
        %v1431 = vsel %vm1237, %v1417, -inf
        %1432 = vmax.xlane.f32.xlu0 %v1431
        %v1433 = vpop.xlane.xlu0 %1432
        %v1434 = vmax.f32 %v1424, -1e+30
        %v1435 = vmax.f32 %v1427, -1e+30
        %v1436 = vmax.f32 %v1430, -1e+30
        %v1437 = vmax.f32 %v1433, -1e+30
        %v1438 = vsub.f32 -1e+30, %v1434
        %v1439 = vsub.f32 -1e+30, %v1435
        %v1440 = vsub.f32 -1e+30, %v1436
        %v1441 = vsub.f32 -1e+30, %v1437
        %v1442 = vmul.f32 %v1438, 1.442695
        %v1443 = vpow.pop %v1442
        %v1444 = vmul.f32 %v1439, 1.442695
        %v1445 = vpow.pop %v1444
        %v1446 = vmul.f32 %v1440, 1.442695
        %v1447 = vpow.pop %v1446
        %v1448 = vmul.f32 %v1441, 1.442695
        %v1449 = vpow.pop %v1448
        %v1450 = vsub.f32 %v1279, %v1434
        %v1451 = vsub.f32 %v1325, %v1435
        %v1452 = vsub.f32 %v1371, %v1436
        %v1453 = vsub.f32 %v1417, %v1437
        %v1454 = vmul.f32 %v1450, 1.442695
        %v1455 = vpow.pop %v1454
        %v1456 = vmul.f32 %v1451, 1.442695
        %v1457 = vpow.pop %v1456
        %v1458 = vmul.f32 %v1452, 1.442695
        %v1459 = vpow.pop %v1458
        %v1460 = vmul.f32 %v1453, 1.442695
        %v1461 = vpow.pop %v1460
        %v1462 = vmul.f32 %v1443, 0.0
        %v1463 = vmul.f32 %v1445, 0.0
        %v1464 = vmul.f32 %v1447, 0.0
        %v1465 = vmul.f32 %v1449, 0.0
        %v1466 = vsel %vm1237, %v1455, 0.0
        %1467 = vadd.xlane.f32.xlu0 %v1466
        %v1468 = vpop.xlane.xlu0 %1467
        %v1469 = vsel %vm1237, %v1457, 0.0
        %1470 = vadd.xlane.f32.xlu0 %v1469
        %v1471 = vpop.xlane.xlu0 %1470
        %v1472 = vsel %vm1237, %v1459, 0.0
        %1473 = vadd.xlane.f32.xlu0 %v1472
        %v1474 = vpop.xlane.xlu0 %1473
        %v1475 = vsel %vm1237, %v1461, 0.0
        %1476 = vadd.xlane.f32.xlu0 %v1475
        %v1477 = vpop.xlane.xlu0 %1476
        %v1478 = vadd.f32 %v1462, %v1468
        %v1479 = vadd.f32 %v1463, %v1471
        %v1480 = vadd.f32 %v1464, %v1474
        %v1481 = vadd.f32 %v1465, %v1477
        %v1482 = vpack.c.bf16 %v1455, %v1455
        %v1483 = vpack.c.bf16 %v1457, %v1457
        %v1484 = vpack.c.bf16 %v1459, %v1459
        %v1485 = vpack.c.bf16 %v1461, %v1461
        %v1487 = vsel %vm1237, %v1482, 0
        %vm1489 = vcmask 1043456
        %v1491 = vsel %vm1489, %v1227, 0
        %1493 = vmatprep.subr.bf16.mxu0 0
        %1494 = vmatpush1.bf16.msra.mxu0 0
        %1495 = vmatprep.subr.bf16.mxu0 0
        %1496 = vmatpush1.bf16.msra.mxu0 0
        %1497 = vmatprep.subr.bf16.mxu0 0
        %1498 = vmatpush1.bf16.msra.mxu0 0
        %1499 = vmatprep.subr.bf16.mxu0 0
        %1500 = vmatpush1.bf16.msra.mxu0 0
        %1501 = vmatprep.subr.bf16.mxu0 0
        %1502 = vmatpush1.bf16.msra.mxu0 0
        %1503 = vmatprep.subr.bf16.mxu0 0
        %1504 = vmatpush1.bf16.msra.mxu0 0
        %1505 = vmatprep.subr.bf16.mxu0 0
        %1506 = vmatpush1.bf16.msra.mxu0 0
        %1507 = vmatprep.subr.bf16.mxu0 0
        %1508 = vmatpush1.bf16.msra.mxu0 %v1491
        %1509 = vmatprep.subr.bf16.mxu0 0
        %1510 = vmatpush2.bf16.msra.mxu0 0
        %1511 = vmatprep.subr.bf16.mxu0 0
        %1512 = vmatpush2.bf16.msra.mxu0 0
        %1513 = vmatprep.subr.bf16.mxu0 0
        %1514 = vmatpush2.bf16.msra.mxu0 0
        %1515 = vmatprep.subr.bf16.mxu0 0
        %1516 = vmatpush2.bf16.msra.mxu0 0
        %1517 = vmatprep.subr.bf16.mxu0 0
        %1518 = vmatpush2.bf16.msra.mxu0 0
        %1519 = vmatprep.subr.bf16.mxu0 0
        %1520 = vmatpush2.bf16.msra.mxu0 0
        %1521 = vmatprep.subr.bf16.mxu0 0
        %1522 = vmatpush2.bf16.msra.mxu0 0
        %1523 = vmatprep.subr.bf16.mxu0 0
        %1524 = vmatpush2.bf16.msra.mxu0 0
        %1525 = vmatprep.mubr.bf16.mxu0 0
        %1526 = vmatmul.mubr.bf16.gmra.mxu0 %v1487
        %v1527 = vpop.f32.mrf.mxu0
        %v1528 = vadd.f32 0.0, %v1527
        %v1529 = vpop.f32.mrf.mxu0
        %v1530 = vpop.f32.mrf.mxu0
        %v1531 = vpop.f32.mrf.mxu0
        %1532 = vdwg.mxu0
        %v1534 = vsel %vm1237, %v1483, 0
        %v1537 = vsel %vm1489, %v1228, 0
        %1539 = vmatprep.subr.bf16.mxu0 0
        %1540 = vmatpush1.bf16.msra.mxu0 0
        %1541 = vmatprep.subr.bf16.mxu0 0
        %1542 = vmatpush1.bf16.msra.mxu0 0
        %1543 = vmatprep.subr.bf16.mxu0 0
        %1544 = vmatpush1.bf16.msra.mxu0 0
        %1545 = vmatprep.subr.bf16.mxu0 0
        %1546 = vmatpush1.bf16.msra.mxu0 0
        %1547 = vmatprep.subr.bf16.mxu0 0
        %1548 = vmatpush1.bf16.msra.mxu0 0
        %1549 = vmatprep.subr.bf16.mxu0 0
        %1550 = vmatpush1.bf16.msra.mxu0 0
        %1551 = vmatprep.subr.bf16.mxu0 0
        %1552 = vmatpush1.bf16.msra.mxu0 0
        %1553 = vmatprep.subr.bf16.mxu0 0
        %1554 = vmatpush1.bf16.msra.mxu0 %v1537
        %1555 = vmatprep.subr.bf16.mxu0 0
        %1556 = vmatpush2.bf16.msra.mxu0 0
        %1557 = vmatprep.subr.bf16.mxu0 0
        %1558 = vmatpush2.bf16.msra.mxu0 0
        %1559 = vmatprep.subr.bf16.mxu0 0
        %1560 = vmatpush2.bf16.msra.mxu0 0
        %1561 = vmatprep.subr.bf16.mxu0 0
        %1562 = vmatpush2.bf16.msra.mxu0 0
        %1563 = vmatprep.subr.bf16.mxu0 0
        %1564 = vmatpush2.bf16.msra.mxu0 0
        %1565 = vmatprep.subr.bf16.mxu0 0
        %1566 = vmatpush2.bf16.msra.mxu0 0
        %1567 = vmatprep.subr.bf16.mxu0 0
        %1568 = vmatpush2.bf16.msra.mxu0 0
        %1569 = vmatprep.subr.bf16.mxu0 0
        %1570 = vmatpush2.bf16.msra.mxu0 0
        %1571 = vmatprep.mubr.bf16.mxu0 0
        %1572 = vmatmul.mubr.bf16.gmra.mxu0 %v1534
        %v1573 = vpop.f32.mrf.mxu0
        %v1574 = vadd.f32 0.0, %v1573
        %v1575 = vpop.f32.mrf.mxu0
        %v1576 = vpop.f32.mrf.mxu0
        %v1577 = vpop.f32.mrf.mxu0
        %1578 = vdwg.mxu0
        %v1580 = vsel %vm1237, %v1484, 0
        %v1583 = vsel %vm1489, %v1229, 0
        %1585 = vmatprep.subr.bf16.mxu0 0
        %1586 = vmatpush1.bf16.msra.mxu0 0
        %1587 = vmatprep.subr.bf16.mxu0 0
        %1588 = vmatpush1.bf16.msra.mxu0 0
        %1589 = vmatprep.subr.bf16.mxu0 0
        %1590 = vmatpush1.bf16.msra.mxu0 0
        %1591 = vmatprep.subr.bf16.mxu0 0
        %1592 = vmatpush1.bf16.msra.mxu0 0
        %1593 = vmatprep.subr.bf16.mxu0 0
        %1594 = vmatpush1.bf16.msra.mxu0 0
        %1595 = vmatprep.subr.bf16.mxu0 0
        %1596 = vmatpush1.bf16.msra.mxu0 0
        %1597 = vmatprep.subr.bf16.mxu0 0
        %1598 = vmatpush1.bf16.msra.mxu0 0
        %1599 = vmatprep.subr.bf16.mxu0 0
        %1600 = vmatpush1.bf16.msra.mxu0 %v1583
        %1601 = vmatprep.subr.bf16.mxu0 0
        %1602 = vmatpush2.bf16.msra.mxu0 0
        %1603 = vmatprep.subr.bf16.mxu0 0
        %1604 = vmatpush2.bf16.msra.mxu0 0
        %1605 = vmatprep.subr.bf16.mxu0 0
        %1606 = vmatpush2.bf16.msra.mxu0 0
        %1607 = vmatprep.subr.bf16.mxu0 0
        %1608 = vmatpush2.bf16.msra.mxu0 0
        %1609 = vmatprep.subr.bf16.mxu0 0
        %1610 = vmatpush2.bf16.msra.mxu0 0
        %1611 = vmatprep.subr.bf16.mxu0 0
        %1612 = vmatpush2.bf16.msra.mxu0 0
        %1613 = vmatprep.subr.bf16.mxu0 0
        %1614 = vmatpush2.bf16.msra.mxu0 0
        %1615 = vmatprep.subr.bf16.mxu0 0
        %1616 = vmatpush2.bf16.msra.mxu0 0
        %1617 = vmatprep.mubr.bf16.mxu0 0
        %1618 = vmatmul.mubr.bf16.gmra.mxu0 %v1580
        %v1619 = vpop.f32.mrf.mxu0
        %v1620 = vadd.f32 0.0, %v1619
        %v1621 = vpop.f32.mrf.mxu0
        %v1622 = vpop.f32.mrf.mxu0
        %v1623 = vpop.f32.mrf.mxu0
        %1624 = vdwg.mxu0
        %v1626 = vsel %vm1237, %v1485, 0
        %v1629 = vsel %vm1489, %v1230, 0
        %1631 = vmatprep.subr.bf16.mxu0 0
        %1632 = vmatpush1.bf16.msra.mxu0 0
        %1633 = vmatprep.subr.bf16.mxu0 0
        %1634 = vmatpush1.bf16.msra.mxu0 0
        %1635 = vmatprep.subr.bf16.mxu0 0
        %1636 = vmatpush1.bf16.msra.mxu0 0
        %1637 = vmatprep.subr.bf16.mxu0 0
        %1638 = vmatpush1.bf16.msra.mxu0 0
        %1639 = vmatprep.subr.bf16.mxu0 0
        %1640 = vmatpush1.bf16.msra.mxu0 0
        %1641 = vmatprep.subr.bf16.mxu0 0
        %1642 = vmatpush1.bf16.msra.mxu0 0
        %1643 = vmatprep.subr.bf16.mxu0 0
        %1644 = vmatpush1.bf16.msra.mxu0 0
        %1645 = vmatprep.subr.bf16.mxu0 0
        %1646 = vmatpush1.bf16.msra.mxu0 %v1629
        %1647 = vmatprep.subr.bf16.mxu0 0
        %1648 = vmatpush2.bf16.msra.mxu0 0
        %1649 = vmatprep.subr.bf16.mxu0 0
        %1650 = vmatpush2.bf16.msra.mxu0 0
        %1651 = vmatprep.subr.bf16.mxu0 0
        %1652 = vmatpush2.bf16.msra.mxu0 0
        %1653 = vmatprep.subr.bf16.mxu0 0
        %1654 = vmatpush2.bf16.msra.mxu0 0
        %1655 = vmatprep.subr.bf16.mxu0 0
        %1656 = vmatpush2.bf16.msra.mxu0 0
        %1657 = vmatprep.subr.bf16.mxu0 0
        %1658 = vmatpush2.bf16.msra.mxu0 0
        %1659 = vmatprep.subr.bf16.mxu0 0
        %1660 = vmatpush2.bf16.msra.mxu0 0
        %1661 = vmatprep.subr.bf16.mxu0 0
        %1662 = vmatpush2.bf16.msra.mxu0 0
        %1663 = vmatprep.mubr.bf16.mxu0 0
        %1664 = vmatmul.mubr.bf16.gmra.mxu0 %v1626
        %v1665 = vpop.f32.mrf.mxu0
        %v1666 = vadd.f32 0.0, %v1665
        %v1667 = vpop.f32.mrf.mxu0
        %v1668 = vpop.f32.mrf.mxu0
        %v1669 = vpop.f32.mrf.mxu0
        %1670 = vdwg.mxu0
        %v1671 = vadd.f32 %v1462, %v1528
        %v1672 = vadd.f32 %v1463, %v1574
        %v1673 = vadd.f32 %v1464, %v1620
        %v1674 = vadd.f32 %v1465, %v1666
        %v1675 = vrcp.pop %v1478
        %v1676 = vrcp.pop %v1479
        %v1677 = vrcp.pop %v1480
        %v1678 = vrcp.pop %v1481
        %v1679 = vmul.f32 %v1671, %v1675
        %v1680 = vmul.f32 %v1672, %v1676
        %v1681 = vmul.f32 %v1673, %v1677
        %v1682 = vmul.f32 %v1674, %v1678
        %v1683 = vpack.c.bf16 %v1679, %v1679
        %v1685 = vunpack.c.l.s4 1983009808
        %v1686 = vunpack.c.0.s8 %v1685
        %v1687 = vlaneseq
        %v1688 = vshrl.u32 %v1687, 7
        %v1689 = vsub.s32 %v1686, %v1688
        %v1690 = vrot.slane %v1683, %v1689
        %v1691 = vpack.c.bf16 %v1681, %v1681
        %v1693 = vunpack.c.l.s4 1983009808
        %v1694 = vunpack.c.0.s8 %v1693
        %v1695 = vlaneseq
        %v1696 = vshrl.u32 %v1695, 7
        %v1697 = vsub.s32 %v1694, %v1696
        %v1698 = vrot.slane %v1691, %v1697
        %v1699 = vcombine.low %v1690, %v1698
        %v1700 = vcombine.high %v1690, %v1698
        %v1702 = vunpack.c.l.s4 1934713408
        %v1703 = vunpack.c.0.s8 %v1702
        %v1704 = vlaneseq
        %v1705 = vshrl.u32 %v1704, 7
        %v1706 = vsub.s32 %v1703, %v1705
        %v1707 = vrot.slane %v1699, %v1706
        %v1709 = vunpack.c.l.s4 1934713408
        %v1710 = vunpack.c.0.s8 %v1709
        %v1711 = vlaneseq
        %v1712 = vshrl.u32 %v1711, 7
        %v1713 = vsub.s32 %v1710, %v1712
        %v1714 = vrot.slane %v1700, %v1713
        %v1715 = vcombine.high %v1707, 0
        %v1716 = vcombine.high %v1714, 0
        %v1717 = vpack.c.bf16 %v1680, %v1680
        %v1719 = vunpack.c.l.s4 1983009808
        %v1720 = vunpack.c.0.s8 %v1719
        %v1721 = vlaneseq
        %v1722 = vshrl.u32 %v1721, 7
        %v1723 = vsub.s32 %v1720, %v1722
        %v1724 = vrot.slane %v1717, %v1723
        %v1725 = vpack.c.bf16 %v1682, %v1682
        %v1727 = vunpack.c.l.s4 1983009808
        %v1728 = vunpack.c.0.s8 %v1727
        %v1729 = vlaneseq
        %v1730 = vshrl.u32 %v1729, 7
        %v1731 = vsub.s32 %v1728, %v1730
        %v1732 = vrot.slane %v1725, %v1731
        %v1733 = vcombine.low %v1724, %v1732
        %v1734 = vcombine.high %v1724, %v1732
        %v1736 = vunpack.c.l.s4 1934713408
        %v1737 = vunpack.c.0.s8 %v1736
        %v1738 = vlaneseq
        %v1739 = vshrl.u32 %v1738, 7
        %v1740 = vsub.s32 %v1737, %v1739
        %v1741 = vrot.slane %v1733, %v1740
        %v1743 = vunpack.c.l.s4 1934713408
        %v1744 = vunpack.c.0.s8 %v1743
        %v1745 = vlaneseq
        %v1746 = vshrl.u32 %v1745, 7
        %v1747 = vsub.s32 %v1744, %v1746
        %v1748 = vrot.slane %v1734, %v1747
        %v1749 = vcombine.high %v1741, 0
        %v1750 = vcombine.high %v1748, 0
        %v1753 = vpack.i.b16 %v1741, %v1707
        %v1755 = vshrl.u32 %v1707, 16
        %v1756 = vshrl.u32 %v1741, 16
        %v1757 = vpack.i.b16 %v1756, %v1755
        %v1761 = vpack.i.b16 %v1749, %v1715
        %v1763 = vshrl.u32 %v1715, 16
        %v1764 = vshrl.u32 %v1749, 16
        %v1765 = vpack.i.b16 %v1764, %v1763
        %v1769 = vpack.i.b16 %v1748, %v1714
        %v1771 = vshrl.u32 %v1714, 16
        %v1772 = vshrl.u32 %v1748, 16
        %v1773 = vpack.i.b16 %v1772, %v1771
        %v1777 = vpack.i.b16 %v1750, %v1716
        %v1779 = vshrl.u32 %v1716, 16
        %v1780 = vshrl.u32 %v1750, 16
        %v1781 = vpack.i.b16 %v1780, %v1779
        %v1783 = vcombine.low %v1753, %v1769
        %v1785 = vunpack.c.l.s4 1983009808
        %v1786 = vunpack.c.0.s8 %v1785
        %v1787 = vlaneseq
        %v1788 = vshrl.u32 %v1787, 7
        %v1789 = vsub.s32 %v1786, %v1788
        %v1790 = vrot.slane %v1783, %v1789
        %v1791 = vcombine.low %v1761, %v1777
        %v1793 = vunpack.c.l.s4 1983009808
        %v1794 = vunpack.c.0.s8 %v1793
        %v1795 = vlaneseq
        %v1796 = vshrl.u32 %v1795, 7
        %v1797 = vsub.s32 %v1794, %v1796
        %v1798 = vrot.slane %v1791, %v1797
        %v1799 = vcombine.low %v1790, %v1798
        %v1801 = vunpack.c.l.s4 1934713408
        %v1802 = vunpack.c.0.s8 %v1801
        %v1803 = vlaneseq
        %v1804 = vshrl.u32 %v1803, 7
        %v1805 = vsub.s32 %v1802, %v1804
        %v1806 = vrot.slane %v1799, %v1805
        %v1807 = vcombine.high %v1806, 0
        %v1808 = vcombine.low %v1757, %v1773
        %v1810 = vunpack.c.l.s4 1983009808
        %v1811 = vunpack.c.0.s8 %v1810
        %v1812 = vlaneseq
        %v1813 = vshrl.u32 %v1812, 7
        %v1814 = vsub.s32 %v1811, %v1813
        %v1815 = vrot.slane %v1808, %v1814
        %v1816 = vcombine.low %v1765, %v1781
        %v1818 = vunpack.c.l.s4 1983009808
        %v1819 = vunpack.c.0.s8 %v1818
        %v1820 = vlaneseq
        %v1821 = vshrl.u32 %v1820, 7
        %v1822 = vsub.s32 %v1819, %v1821
        %v1823 = vrot.slane %v1816, %v1822
        %v1824 = vcombine.low %v1815, %v1823
        %v1826 = vunpack.c.l.s4 1934713408
        %v1827 = vunpack.c.0.s8 %v1826
        %v1828 = vlaneseq
        %v1829 = vshrl.u32 %v1828, 7
        %v1830 = vsub.s32 %v1827, %v1829
        %v1831 = vrot.slane %v1824, %v1830
        %v1832 = vcombine.high %v1831, 0
        %v1835 = vpack.i.b16 %v1831, %v1806
        %v1836 = vshrl.u32 %v1806, 16
        %v1837 = vshrl.u32 %v1831, 16
        %v1838 = vpack.i.b16 %v1837, %v1836
        %v1841 = vpack.i.b16 %v1832, %v1807
        %v1842 = vshrl.u32 %v1807, 16
        %v1843 = vshrl.u32 %v1832, 16
        %v1844 = vpack.i.b16 %v1843, %v1842
        %1845 = vrot.lane.b32.xlu0 %v1838, 8
        %v1846 = vpop.permute.xlu0 %1845
        %1847 = vrot.lane.b32.xlu0 %v1841, 16
        %v1848 = vpop.permute.xlu0 %1847
        %1849 = vrot.lane.b32.xlu0 %v1844, 24
        %v1850 = vpop.permute.xlu0 %1849
        %v1853 = vsel %vm1237, %v1835, %v1846
        %vm1854 = vcmask 130048
        %v1856 = vsel %vm1854, %v1853, %v1848
        %vm1857 = vcmask 195584
        %v1859 = vsel %vm1857, %v1856, %v1850
        %v1860 = vld [vmem:[%s6] sm:$0xf]
        %v1861 = vld [vmem:[%s6 + $0x4] sm:$0xf]
        %v1862 = vld [vmem:[%s6 + $0x8] sm:$0xf]
        %v1863 = vld [vmem:[%s6 + $0xc] sm:$0xf]
        %v1864 = vld [vmem:[%s7] sm:$0x1]
        %v1866 = vlaneseq
        %v1867 = vshrl.u32 %v1866, 7
        %v1868 = vsub.s32 0, %v1867
        %v1869 = vrot.slane %v1864, %v1868
        %v1875 = vunpack.c.l.b16 %v1860
        %v1876 = vunpack.c.l.b16 %v1861
        %v1877 = vunpack.c.l.b16 %v1862
        %v1878 = vunpack.c.l.b16 %v1863
        %v1879 = vpack.c.b16 %v1876, %v1875
        %v1880 = vpack.c.b16 %v1878, %v1877
        %v1883 = vsel %vm1009, %v1859, 0
        %1885 = vmatprep.subr.bf16.mxu0 0
        %1886 = vmatpush1.bf16.msra.mxu0 0
        %1887 = vmatprep.subr.bf16.mxu0 0
        %1888 = vmatpush1.bf16.msra.mxu0 0
        %1889 = vmatprep.subr.bf16.mxu0 0
        %1890 = vmatpush1.bf16.msra.mxu0 0
        %1891 = vmatprep.subr.bf16.mxu0 0
        %1892 = vmatpush1.bf16.msra.mxu0 0
        %1893 = vmatprep.subr.bf16.mxu0 0
        %1894 = vmatpush1.bf16.msra.mxu0 0
        %1895 = vmatprep.subr.bf16.mxu0 0
        %1896 = vmatpush1.bf16.msra.mxu0 0
        %1897 = vmatprep.subr.bf16.mxu0 0
        %1898 = vmatpush1.bf16.msra.mxu0 %v1880
        %1899 = vmatprep.subr.bf16.mxu0 0
        %1900 = vmatpush1.bf16.msra.mxu0 %v1879
        %1901 = vmatprep.subr.bf16.mxu0 0
        %1902 = vmatpush2.bf16.msra.mxu0 0
        %1903 = vmatprep.subr.bf16.mxu0 0
        %1904 = vmatpush2.bf16.msra.mxu0 0
        %1905 = vmatprep.subr.bf16.mxu0 0
        %1906 = vmatpush2.bf16.msra.mxu0 0
        %1907 = vmatprep.subr.bf16.mxu0 0
        %1908 = vmatpush2.bf16.msra.mxu0 0
        %1909 = vmatprep.subr.bf16.mxu0 0
        %1910 = vmatpush2.bf16.msra.mxu0 0
        %1911 = vmatprep.subr.bf16.mxu0 0
        %1912 = vmatpush2.bf16.msra.mxu0 0
        %1913 = vmatprep.subr.bf16.mxu0 0
        %1914 = vmatpush2.bf16.msra.mxu0 0
        %1915 = vmatprep.subr.bf16.mxu0 0
        %1916 = vmatpush2.bf16.msra.mxu0 0
        %1917 = vmatprep.mubr.bf16.mxu0 0
        %1918 = vmatmul.mubr.bf16.gmra.mxu0 %v1883
        %v1919 = vpop.f32.mrf.mxu0
        %v1920 = vadd.f32 %v1869, %v1919
        %v1921 = vpop.f32.mrf.mxu0
        %v1922 = vpop.f32.mrf.mxu0
        %v1923 = vpop.f32.mrf.mxu0
        %1924 = vdwg.mxu0
        %v1925 = vunpack.c.l.bf16 %v984
        %v1926 = vadd.f32 %v1925, %v1920
        %v1927 = vld [vmem:[%s8] sm:$0x1]
        %v1928 = vld [vmem:[%s9] sm:$0x1]
        %v1929 = vsel %vm1009, %v1926, 0.0
        %1930 = vadd.xlane.f32.xlu0 %v1929
        %v1931 = vpop.xlane.xlu0 %1930
        %v1932 = vrcp.pop 32.0
        %v1933 = vmul.f32 %v1931, %v1932
        %v1934 = vsub.f32 %v1926, %v1933
        %v1935 = vmul.f32 %v1934, %v1934
        %v1936 = vsel %vm1009, %v1935, 0.0
        %1937 = vadd.xlane.f32.xlu0 %v1936
        %v1938 = vpop.xlane.xlu0 %1937
        %v1939 = vmul.f32 %v1938, %v1932
        %v1940 = vadd.f32 %v1939, 1e-12
        %v1941 = vrsqrt.pop %v1940
        %v1942 = vmul.f32 %v1934, %v1941
        %v1944 = vlaneseq
        %v1945 = vshrl.u32 %v1944, 7
        %v1946 = vsub.s32 0, %v1945
        %v1947 = vrot.slane %v1927, %v1946
        %v1949 = vmul.f32 %v1942, %v1947
        %v1951 = vlaneseq
        %v1952 = vshrl.u32 %v1951, 7
        %v1953 = vsub.s32 0, %v1952
        %v1954 = vrot.slane %v1928, %v1953
        %v1956 = vadd.f32 %v1949, %v1954
        %v1957 = vpack.c.bf16 %v1956, %v1956
        %v1958 = vld [vmem:[#allocation9] sm:$0xf]
        %v1959 = vld [vmem:[#allocation9 + $0x4] sm:$0xf]
        %v1960 = vld [vmem:[#allocation9 + $0x8] sm:$0xf]
        %v1961 = vld [vmem:[#allocation9 + $0xc] sm:$0xf]
        %v1962 = vld [vmem:[#allocation10] sm:$0x1]
        %v1964 = vlaneseq
        %v1965 = vshrl.u32 %v1964, 7
        %v1966 = vsub.s32 0, %v1965
        %v1967 = vrot.slane %v1962, %v1966
        %v1973 = vunpack.c.l.b16 %v1958
        %v1974 = vunpack.c.l.b16 %v1959
        %v1975 = vunpack.c.l.b16 %v1960
        %v1976 = vunpack.c.l.b16 %v1961
        %v1977 = vpack.c.b16 %v1974, %v1973
        %v1978 = vpack.c.b16 %v1976, %v1975
        %v1982 = vsel %vm1009, %v1957, 0
        %1984 = vmatprep.subr.bf16.mxu0 0
        %1985 = vmatpush1.bf16.msra.mxu0 0
        %1986 = vmatprep.subr.bf16.mxu0 0
        %1987 = vmatpush1.bf16.msra.mxu0 0
        %1988 = vmatprep.subr.bf16.mxu0 0
        %1989 = vmatpush1.bf16.msra.mxu0 0
        %1990 = vmatprep.subr.bf16.mxu0 0
        %1991 = vmatpush1.bf16.msra.mxu0 0
        %1992 = vmatprep.subr.bf16.mxu0 0
        %1993 = vmatpush1.bf16.msra.mxu0 0
        %1994 = vmatprep.subr.bf16.mxu0 0
        %1995 = vmatpush1.bf16.msra.mxu0 0
        %1996 = vmatprep.subr.bf16.mxu0 0
        %1997 = vmatpush1.bf16.msra.mxu0 %v1978
        %1998 = vmatprep.subr.bf16.mxu0 0
        %1999 = vmatpush1.bf16.msra.mxu0 %v1977
        %2000 = vmatprep.subr.bf16.mxu0 0
        %2001 = vmatpush2.bf16.msra.mxu0 0
        %2002 = vmatprep.subr.bf16.mxu0 0
        %2003 = vmatpush2.bf16.msra.mxu0 0
        %2004 = vmatprep.subr.bf16.mxu0 0
        %2005 = vmatpush2.bf16.msra.mxu0 0
        %2006 = vmatprep.subr.bf16.mxu0 0
        %2007 = vmatpush2.bf16.msra.mxu0 0
        %2008 = vmatprep.subr.bf16.mxu0 0
        %2009 = vmatpush2.bf16.msra.mxu0 0
        %2010 = vmatprep.subr.bf16.mxu0 0
        %2011 = vmatpush2.bf16.msra.mxu0 0
        %2012 = vmatprep.subr.bf16.mxu0 0
        %2013 = vmatpush2.bf16.msra.mxu0 0
        %2014 = vmatprep.subr.bf16.mxu0 0
        %2015 = vmatpush2.bf16.msra.mxu0 0
        %2016 = vmatprep.mubr.bf16.mxu0 0
        %2017 = vmatmul.mubr.bf16.gmra.mxu0 %v1982
        %v2018 = vpop.f32.mrf.mxu0
        %v2019 = vadd.f32 %v1967, %v2018
        %v2020 = vpop.f32.mrf.mxu0
        %v2021 = vpop.f32.mrf.mxu0
        %v2022 = vpop.f32.mrf.mxu0
        %2023 = vdwg.mxu0
        %v2024 = vmul.f32 %v2019, 0.5
        %v2025 = vmul.f32 %v2019, 0.044715
        %v2026 = vmul.f32 %v2025, %v2019
        %v2027 = vmul.f32 %v2026, %v2019
        %v2028 = vadd.f32 %v2019, %v2027
        %v2029 = vmul.f32 %v2028, 0.7978846
        %v2030 = vtanh.pop %v2029
        %v2031 = vadd.f32 %v2030, 1.0
        %v2032 = vmul.f32 %v2024, %v2031
        %v2033 = vpack.c.bf16 %v2032, %v2032
        %v2034 = vld [vmem:[%s12] sm:$0xf]
        %v2035 = vld [vmem:[%s12 + $0x4] sm:$0xf]
        %v2036 = vld [vmem:[%s12 + $0x8] sm:$0xf]
        %v2037 = vld [vmem:[%s12 + $0xc] sm:$0xf]
        %v2038 = vld [vmem:[%s12 + $0x10] sm:$0xf]
        %v2039 = vld [vmem:[%s12 + $0x14] sm:$0xf]
        %v2040 = vld [vmem:[%s12 + $0x18] sm:$0xf]
        %v2041 = vld [vmem:[%s12 + $0x1c] sm:$0xf]
        %v2042 = vld [vmem:[%s13] sm:$0x1]
        %v2044 = vlaneseq
        %v2045 = vshrl.u32 %v2044, 7
        %v2046 = vsub.s32 0, %v2045
        %v2047 = vrot.slane %v2042, %v2046
        %v2057 = vunpack.c.l.b16 %v2034
        %v2058 = vunpack.c.l.b16 %v2035
        %v2059 = vunpack.c.l.b16 %v2036
        %v2060 = vunpack.c.l.b16 %v2037
        %v2061 = vunpack.c.l.b16 %v2038
        %v2062 = vunpack.c.l.b16 %v2039
        %v2063 = vunpack.c.l.b16 %v2040
        %v2064 = vunpack.c.l.b16 %v2041
        %v2065 = vpack.c.b16 %v2058, %v2057
        %v2066 = vpack.c.b16 %v2060, %v2059
        %v2067 = vpack.c.b16 %v2062, %v2061
        %v2068 = vpack.c.b16 %v2064, %v2063
        %vm2073 = vcmask 523264
        %v2075 = vsel %vm2073, %v2033, 0
        %2077 = vmatprep.subr.bf16.mxu0 0
        %2078 = vmatpush1.bf16.msra.mxu0 0
        %2079 = vmatprep.subr.bf16.mxu0 0
        %2080 = vmatpush1.bf16.msra.mxu0 0
        %2081 = vmatprep.subr.bf16.mxu0 0
        %2082 = vmatpush1.bf16.msra.mxu0 0
        %2083 = vmatprep.subr.bf16.mxu0 0
        %2084 = vmatpush1.bf16.msra.mxu0 0
        %2085 = vmatprep.subr.bf16.mxu0 0
        %2086 = vmatpush1.bf16.msra.mxu0 %v2068
        %2087 = vmatprep.subr.bf16.mxu0 0
        %2088 = vmatpush1.bf16.msra.mxu0 %v2067
        %2089 = vmatprep.subr.bf16.mxu0 0
        %2090 = vmatpush1.bf16.msra.mxu0 %v2066
        %2091 = vmatprep.subr.bf16.mxu0 0
        %2092 = vmatpush1.bf16.msra.mxu0 %v2065
        %2093 = vmatprep.subr.bf16.mxu0 0
        %2094 = vmatpush2.bf16.msra.mxu0 0
        %2095 = vmatprep.subr.bf16.mxu0 0
        %2096 = vmatpush2.bf16.msra.mxu0 0
        %2097 = vmatprep.subr.bf16.mxu0 0
        %2098 = vmatpush2.bf16.msra.mxu0 0
        %2099 = vmatprep.subr.bf16.mxu0 0
        %2100 = vmatpush2.bf16.msra.mxu0 0
        %2101 = vmatprep.subr.bf16.mxu0 0
        %2102 = vmatpush2.bf16.msra.mxu0 0
        %2103 = vmatprep.subr.bf16.mxu0 0
        %2104 = vmatpush2.bf16.msra.mxu0 0
        %2105 = vmatprep.subr.bf16.mxu0 0
        %2106 = vmatpush2.bf16.msra.mxu0 0
        %2107 = vmatprep.subr.bf16.mxu0 0
        %2108 = vmatpush2.bf16.msra.mxu0 0
        %2109 = vmatprep.mubr.bf16.mxu0 0
        %2110 = vmatmul.mubr.bf16.gmra.mxu0 %v2075
        %v2111 = vpop.f32.mrf.mxu0
        %v2112 = vadd.f32 %v2047, %v2111
        %v2113 = vpop.f32.mrf.mxu0
        %v2114 = vpop.f32.mrf.mxu0
        %v2115 = vpop.f32.mrf.mxu0
        %2116 = vdwg.mxu0
        %v2117 = vadd.f32 %v2112, %v1956
        %v2118 = vld [vmem:[%s14] sm:$0x1]
        %v2119 = vld [vmem:[%s15] sm:$0x1]
        %v2120 = vsel %vm1009, %v2117, 0.0
        %2121 = vadd.xlane.f32.xlu0 %v2120
        %v2122 = vpop.xlane.xlu0 %2121
        %v2123 = vmul.f32 %v2122, %v1932
        %v2124 = vsub.f32 %v2117, %v2123
        %v2125 = vmul.f32 %v2124, %v2124
        %v2126 = vsel %vm1009, %v2125, 0.0
        %2127 = vadd.xlane.f32.xlu0 %v2126
        %v2128 = vpop.xlane.xlu0 %2127
        %v2129 = vmul.f32 %v2128, %v1932
        %v2130 = vadd.f32 %v2129, 1e-12
        %v2131 = vrsqrt.pop %v2130
        %v2132 = vmul.f32 %v2124, %v2131
        %v2134 = vlaneseq
        %v2135 = vshrl.u32 %v2134, 7
        %v2136 = vsub.s32 0, %v2135
        %v2137 = vrot.slane %v2118, %v2136
        %v2139 = vmul.f32 %v2132, %v2137
        %v2141 = vlaneseq
        %v2142 = vshrl.u32 %v2141, 7
        %v2143 = vsub.s32 0, %v2142
        %v2144 = vrot.slane %v2119, %v2143
        %v2146 = vadd.f32 %v2139, %v2144
        %v2147 = vpack.c.bf16 %v2146, %v2146
        %vm2148 = vcmask 257024
        %2149 = vst.msk [vmem:[%s594] sm:$0xf] %vm2148, %v2147
        %s2150 = sand.u32 %s403, 1
        %s2151 = scalar_lea.sflag [#allocation6], %s2150
        %s2152 = sand.u32 %s403, 1
        %s2153 = smul.addr %s2152, 4
        %s2154 = scalar_lea.vmem [#allocation12], %s2153
        // Predicated region
        $region105: #{tpu_custom_call.1} parent=83 // pred_check
          %p2155 = pneg %p413
        $region106: #{tpu_custom_call.1} parent=83 // pred_check_branch
          %2157 = sbr.rel (%p2155) target = $region108
        $region107: #{tpu_custom_call.1} parent=83 // pred_region
          %s2159 = ssub.s32 64, 64
          %2160 = vsyncadd %s2151, %s2159
          %s2161 = sadd.s32 %s40, %s39
          %s2162 = smul.addr %s2161, 64
          %s2163 = scalar_lea.hbm %s16, %s2162
          %s2165 = sshll.u32 %s2154, 4
          %s2166 = int_to_ptr.vmem [resolvable:$true] %s2165
          %2168 = dma.vmem_to_hbm [thread:$0]  %s2166, 64, %s2163, %s2151
        $region108: #{tpu_custom_call.1} parent=83 // pred_fallthru
          _
      $region84: #{tpu_custom_call.1} parent=5 // pred_fallthru
        _
      %p2169 = scmp.le.s32.totalorder 2, %s30
      // Predicated region
      $region109: #{tpu_custom_call.1} parent=5 // pred_check
        %p2170 = pneg %p2169
      $region110: #{tpu_custom_call.1} parent=5 // pred_check_branch
        %2172 = sbr.rel (%p2170) target = $region112
      $region111: #{tpu_custom_call.1} parent=5 // pred_region
        %s2173 = ssub.s32 %s30, 2
        // Predicated region
        $region113: #{tpu_custom_call.1} parent=111 // pred_check
          %p2174 = pneg %p419
        $region114: #{tpu_custom_call.1} parent=111 // pred_check_branch
          %2176 = sbr.rel (%p2174) target = $region116
        $region115: #{tpu_custom_call.1} parent=111 // pred_region
          %s2177 = sand.u32 %s404, 1
          %s2178 = scalar_lea.sflag [#allocation6], %s2177
          %s2179 = sand.u32 %s404, 1
          %s2180 = smul.addr %s2179, 4
          %s2181 = scalar_lea.vmem [#allocation12], %s2180
          %2182 = dma.done %s2178, 64
        $region116: #{tpu_custom_call.1} parent=111 // pred_fallthru
          _
      $region112: #{tpu_custom_call.1} parent=5 // pred_fallthru
        _
    $region6: #{tpu_custom_call.1} parent=1 // loop_footer
      %s34 = sadd.s32 1, %s30
    $region7: #{tpu_custom_call.1} parent=1 // loop_footer_branch
      %29 = sbr.rel target = $region3
    $region8: #{tpu_custom_call.1} parent=1 // loop_exit
      _
    %2183 = vsyncpa [#allocation5], 1
    %s2184 = scalar_lea.sflag [#allocation5], 1
    %2185 = vsyncpa %s2184, 1
    %2186 = vsyncpa [#allocation8], 1
    %s2187 = scalar_lea.sflag [#allocation8], 1
    %2188 = vsyncpa %s2187, 1
    %2189 = vsyncpa [#allocation11], 1
    %2190 = vsyncpa [#allocation6], 1
    %s2191 = scalar_lea.sflag [#allocation6], 1
    %2192 = vsyncpa %s2191, 1

</llo_original>
